<compile_context>
chip_gen: v7x
topology: tpu7x:2x2x1
jax: 0.10.0
libtpu: 0.0.40
codegen_flags: <defaults>
</compile_context>

<pallas_src>
import functools

import jax
import jax.numpy as jnp
from jax.experimental import pallas as pl
from jax.experimental.pallas import tpu as pltpu


def _conv_bn_relu_kernel(x_ref, w_ref, bias_ref, o_ref, xp_ref, *, k, relued):
    """One (batch, row-block) grid step.

    x_ref:    (H, W, Cin)          bf16  full image for this batch element
                                         (resident across the row-block axis)
    w_ref:    (K*K*Cin, Cout)      bf16  conv weights with BN scale pre-folded
    bias_ref: (1, Cout)            f32   folded BN bias
    o_ref:    (TH, W, Cout)        out   output row block (real Cout, unpadded)
    xp_ref:   (TH+2p, W+2p, Cin)   bf16  VMEM scratch: zero-padded halo slab
    """
    h, w, cin = x_ref.shape
    cout = w_ref.shape[-1]
    th = o_ref.shape[0]
    pad = (k - 1) // 2
    r = pl.program_id(1)

    # ---- Stage only this row block's halo slab (bf16, slab-sized) -----------
    # Zeroing the whole slab handles the left/right column pads and any
    # out-of-image halo rows in one cheap pass; it is O(TH*W*Cin), not O(H*W*Cin).
    xp_ref[...] = jnp.zeros_like(xp_ref)
    row0 = r * th - pad                       # source image row of slab row 0
    for j in range(th + 2 * pad):
        src = row0 + j

        def _stage(j=j, src=src):
            xp_ref[j, pad:pad + w, :] = x_ref[src, :, :]

        if pad <= j < th + pad:
            _stage()                          # interior rows are always in range
        else:
            pl.when(jnp.logical_and(src >= 0, src < h))(_stage)

    # ---- im2col patch + single MXU matmul (contraction depth K*K*Cin) -------
    pieces = [xp_ref[ky:ky + th, kx:kx + w, :]            # (TH, W, Cin) each
              for ky in range(k) for kx in range(k)]
    patch = jnp.concatenate(pieces, axis=-1)              # (TH, W, K*K*Cin) bf16
    patch = patch.reshape(th * w, k * k * cin)

    y = jnp.dot(patch, w_ref[...],
                preferred_element_type=jnp.float32)       # (TH*W, Cout) f32

    # ---- Epilogue: folded BN bias + optional ReLU, single store -------------
    y = y + bias_ref[...]
    if relued:
        y = jnp.maximum(y, 0.0)
    o_ref[...] = y.reshape(th, w, cout).astype(o_ref.dtype)


def conv_bn_relu(x_nchw, weight_oihw, gamma, beta, running_mean, running_var,
                 *, eps=1e-5, relued=True, row_tile=8, out_dtype=jnp.float32):
    """Forward pass of models/warping.py::Conv (stride=1, odd k, eval-mode BN)."""
    n, cin, h, w = x_nchw.shape
    cout, _, k, _ = weight_oihw.shape
    pad = (k - 1) // 2
    # TODO(synk): only the module defaults (stride=1, odd kernel_size) are implemented.

    # PyTorch-facing boundary is NCHW; the kernel runs NHWC. In a full network
    # keep activations NHWC (and bf16) end-to-end so this transpose and the final
    # one happen once per model, not once per layer.
    x_nhwc = jnp.transpose(x_nchw, (0, 2, 3, 1)).astype(jnp.bfloat16)
    # TODO(synk): for tiny Cin at large H*W, collapse (W, Cin) into the trailing
    # axis so the x block / scratch are lane-dense (avoids up-to-32x lane padding
    # in VMEM); immaterial at these small test shapes.

    # Fold eval-mode BatchNorm: scale into the weights; bias stays for the epilogue.
    scale = (gamma / jnp.sqrt(running_var + eps)).astype(jnp.float32)       # (Cout,)
    bias = (beta - running_mean * scale).astype(jnp.float32)                # (Cout,)
    w_hwio = jnp.transpose(
        weight_oihw.astype(jnp.float32) * scale[:, None, None, None],
        (2, 3, 1, 0))                                                       # (K, K, Cin, Cout)
    w_folded = w_hwio.reshape(k * k * cin, cout).astype(jnp.bfloat16)       # (K*K*Cin, Cout)
    bias_2d = bias.reshape(1, cout)

    # Row tile: largest divisor of H that is <= row_tile (never one huge block
    # when H % row_tile != 0).  Tune row_tile per generation so TH*W is a few
    # hundred+ elements and the block budget fits VMEM (v7x: 64 MiB total).
    th = max(d for d in range(1, min(row_tile, h) + 1) if h % d == 0)
    grid = (n, h // th)

    flops = 2 * n * h * w * k * k * cin * cout
    bytes_accessed = (n * h * w * cin * 2                   # x (bf16)
                      + k * k * cin * cout * 2              # folded weights (bf16)
                      + cout * 4                            # bias (f32)
                      + n * h * w * cout * jnp.dtype(out_dtype).itemsize)
    cost = pl.CostEstimate(flops=flops, transcendentals=0,
                           bytes_accessed=bytes_accessed)

    out_nhwc = pl.pallas_call(
        functools.partial(_conv_bn_relu_kernel, k=k, relued=relued),
        out_shape=jax.ShapeDtypeStruct((n, h, w, cout), out_dtype),
        grid_spec=pltpu.PrefetchScalarGridSpec(
            num_scalar_prefetch=0,
            grid=grid,
            in_specs=[
                pl.BlockSpec((None, h, w, cin), lambda b, r: (b, 0, 0, 0)),
                pl.BlockSpec((k * k * cin, cout), lambda b, r: (0, 0)),
                pl.BlockSpec((1, cout), lambda b, r: (0, 0)),
            ],
            out_specs=pl.BlockSpec((None, th, w, cout), lambda b, r: (b, r, 0, 0)),
            scratch_shapes=[
                pltpu.VMEM((th + 2 * pad, w + 2 * pad, cin), jnp.bfloat16),
            ],
        ),
        compiler_params=pltpu.CompilerParams(
            dimension_semantics=("parallel", "parallel"),
            vmem_limit_bytes=32 * 1024 * 1024),
        cost_estimate=cost,
    )(x_nhwc, w_folded, bias_2d)

    # Back to the PyTorch NCHW boundary (drop this inside a full NHWC network).
    return jnp.transpose(out_nhwc, (0, 3, 1, 2))


def _reference(x_nchw, weight_oihw, gamma, beta, running_mean, running_var,
               *, eps=1e-5, relued=True, match_bf16=False):
    scale = gamma / jnp.sqrt(running_var + eps)
    bias = beta - running_mean * scale
    w = weight_oihw.astype(jnp.float32) * scale[:, None, None, None]
    xx = x_nchw.astype(jnp.float32)
    if match_bf16:
        xx = xx.astype(jnp.bfloat16)
        w = w.astype(jnp.bfloat16)
    pad_ = (weight_oihw.shape[-1] - 1) // 2
    y = jax.lax.conv_general_dilated(
        xx, w, window_strides=(1, 1), padding=((pad_, pad_), (pad_, pad_)),
        dimension_numbers=("NCHW", "OIHW", "NCHW"),
        preferred_element_type=jnp.float32)
    y = y + bias[None, :, None, None]
    if relued:
        y = jnp.maximum(y, 0.0)
    return y


if __name__ == "__main__":
    key = jax.random.PRNGKey(0)
    k_x, k_w, k_g, k_b, k_m, k_v = jax.random.split(key, 6)

    N, Cin, H, W = 2, 4, 16, 16
    Cout, K = 8, 3

    x = jax.random.normal(k_x, (N, Cin, H, W), jnp.float32)
    # Conv2d weight is OIHW, bias=False; BN params are eval-mode running stats.
    weight = jax.random.normal(k_w, (Cout, Cin, K, K), jnp.float32) * 0.1
    gamma = 1.0 + 0.1 * jax.random.normal(k_g, (Cout,), jnp.float32)
    beta = 0.1 * jax.random.normal(k_b, (Cout,), jnp.float32)
    running_mean = 0.1 * jax.random.normal(k_m, (Cout,), jnp.float32)
    running_var = jnp.abs(jax.random.normal(k_v, (Cout,), jnp.float32)) + 0.5

    for relued in (True, False):
        out = conv_bn_relu(x, weight, gamma, beta, running_mean, running_var,
                           relued=relued)
        out = jax.block_until_ready(out)
        assert out.shape == (N, Cout, H, W) and out.dtype == jnp.float32

        # Tight check vs a reference using the same bf16 inputs / folded weights
        # with f32 accumulation (validates index math / halo staging / epilogue).
        ref_bf16 = _reference(x, weight, gamma, beta, running_mean, running_var,
                              relued=relued, match_bf16=True)
        assert jnp.allclose(out, ref_bf16, atol=5e-3, rtol=5e-3), (
            float(jnp.max(jnp.abs(out - ref_bf16))))

        # Loose check vs the exact f32 PyTorch-semantics reference
        # (difference is only bf16 input/weight quantization).
        ref_f32 = _reference(x, weight, gamma, beta, running_mean, running_var,
                             relued=relued, match_bf16=False)
        assert jnp.allclose(out, ref_f32, atol=5e-2, rtol=5e-2), (
            float(jnp.max(jnp.abs(out - ref_f32))))

    # bf16-output path (network-internal format: halves output HBM bytes).
    out_bf16 = conv_bn_relu(x, weight, gamma, beta, running_mean, running_var,
                            relued=True, out_dtype=jnp.bfloat16)
    out_bf16 = jax.block_until_ready(out_bf16)
    ref_bf16 = _reference(x, weight, gamma, beta, running_mean, running_var,
                          relued=True, match_bf16=True)
    assert jnp.allclose(out_bf16.astype(jnp.float32), ref_bf16,
                        atol=3e-2, rtol=3e-2), (
        float(jnp.max(jnp.abs(out_bf16.astype(jnp.float32) - ref_bf16))))

    print("KERNEL_OK")
</pallas_src>

<mosaic_0001>
module attributes {stable_mosaic.version = 11 : i64} {
  func.func @_conv_bn_relu_kernel(%arg0: i32, %arg1: i32, %arg2: memref<1x16x16x4xbf16, #tpu.memory_space<vmem>>, %arg3: memref<36x8xbf16, #tpu.memory_space<vmem>>, %arg4: memref<1x8xf32, #tpu.memory_space<vmem>>, %arg5: memref<1x8x16x8xf32, #tpu.memory_space<vmem>>, %arg6: memref<10x18x4xbf16, #tpu.memory_space<vmem>>) attributes {dimension_semantics = [#tpu.dimension_semantics<parallel>, #tpu.dimension_semantics<parallel>], iteration_bounds = array<i64: 2, 2>, scalar_prefetch = 0 : i64, scratch_operands = 1 : i64, tpu.core_type = #tpu.core_type<tc>, window_params = [{transform_indices = @transform_0, window_bounds = array<i64: 1, 16, 16, 4>}, {pipeline_mode = #tpu.pipeline_mode<synchronous>, transform_indices = @transform_1, window_bounds = array<i64: 36, 8>}, {pipeline_mode = #tpu.pipeline_mode<synchronous>, transform_indices = @transform_2, window_bounds = array<i64: 1, 8>}, {transform_indices = @transform_3, window_bounds = array<i64: 1, 8, 16, 8>}]} {
    %cst = arith.constant 0.000000e+00 : bf16
    %0 = vector.broadcast %cst : bf16 to vector<10x18x4xbf16>
    %c0 = arith.constant 0 : index
    %c0_0 = arith.constant 0 : index
    %c0_1 = arith.constant 0 : index
    %1 = vector.load %arg6[%c0, %c0_0, %c0_1] : memref<10x18x4xbf16, #tpu.memory_space<vmem>>, vector<10x18x4xbf16>
    tpu.vector_store %arg6[%c0, %c0_0, %c0_1], %0 {strides = array<i32>} : memref<10x18x4xbf16, #tpu.memory_space<vmem>>, vector<10x18x4xbf16>,
    %c8_i32 = arith.constant 8 : i32
    %2 = arith.muli %arg1, %c8_i32 : i32
    %c1_i32 = arith.constant 1 : i32
    %3 = arith.subi %2, %c1_i32 : i32
    %c0_i32 = arith.constant 0 : i32
    %4 = arith.addi %3, %c0_i32 : i32
    %c0_i32_2 = arith.constant 0 : i32
    %5 = arith.cmpi sge, %4, %c0_i32_2 : i32
    %c16_i32 = arith.constant 16 : i32
    %6 = arith.cmpi slt, %4, %c16_i32 : i32
    %7 = arith.andi %5, %6 : i1
    %8 = arith.extui %7 : i1 to i32
    %c0_i32_3 = arith.constant 0 : i32
    %9 = arith.cmpi ne, %8, %c0_i32_3 : i32
    scf.if %9 {
      %c0_86 = arith.constant 0 : index
      %94 = arith.index_cast %4 : i32 to index
      %c0_87 = arith.constant 0 : index
      %c0_88 = arith.constant 0 : index
      %95 = vector.load %arg2[%c0_86, %94, %c0_87, %c0_88] : memref<1x16x16x4xbf16, #tpu.memory_space<vmem>>, vector<1x1x16x4xbf16>
      %96 = vector.shape_cast %95 : vector<1x1x16x4xbf16> to vector<16x4xbf16>
      %c0_89 = arith.constant 0 : index
      %c1_90 = arith.constant 1 : index
      %c0_91 = arith.constant 0 : index
      %97 = vector.load %arg6[%c0_89, %c1_90, %c0_91] : memref<10x18x4xbf16, #tpu.memory_space<vmem>>, vector<1x16x4xbf16>
      %98 = vector.shape_cast %97 : vector<1x16x4xbf16> to vector<16x4xbf16>
      %99 = vector.shape_cast %96 : vector<16x4xbf16> to vector<1x16x4xbf16>
      tpu.vector_store %arg6[%c0_89, %c1_90, %c0_91], %99 {strides = array<i32>} : memref<10x18x4xbf16, #tpu.memory_space<vmem>>, vector<1x16x4xbf16>,
    } else {
    }
    %c1_i32_4 = arith.constant 1 : i32
    %10 = arith.addi %3, %c1_i32_4 : i32
    %c0_5 = arith.constant 0 : index
    %11 = arith.index_cast %10 : i32 to index
    %c0_6 = arith.constant 0 : index
    %c0_7 = arith.constant 0 : index
    %12 = vector.load %arg2[%c0_5, %11, %c0_6, %c0_7] : memref<1x16x16x4xbf16, #tpu.memory_space<vmem>>, vector<1x1x16x4xbf16>
    %13 = vector.shape_cast %12 : vector<1x1x16x4xbf16> to vector<16x4xbf16>
    %c1 = arith.constant 1 : index
    %c1_8 = arith.constant 1 : index
    %c0_9 = arith.constant 0 : index
    %14 = vector.load %arg6[%c1, %c1_8, %c0_9] : memref<10x18x4xbf16, #tpu.memory_space<vmem>>, vector<1x16x4xbf16>
    %15 = vector.shape_cast %14 : vector<1x16x4xbf16> to vector<16x4xbf16>
    %16 = vector.shape_cast %13 : vector<16x4xbf16> to vector<1x16x4xbf16>
    tpu.vector_store %arg6[%c1, %c1_8, %c0_9], %16 {strides = array<i32>} : memref<10x18x4xbf16, #tpu.memory_space<vmem>>, vector<1x16x4xbf16>,
    %c2_i32 = arith.constant 2 : i32
    %17 = arith.addi %3, %c2_i32 : i32
    %c0_10 = arith.constant 0 : index
    %18 = arith.index_cast %17 : i32 to index
    %c0_11 = arith.constant 0 : index
    %c0_12 = arith.constant 0 : index
    %19 = vector.load %arg2[%c0_10, %18, %c0_11, %c0_12] : memref<1x16x16x4xbf16, #tpu.memory_space<vmem>>, vector<1x1x16x4xbf16>
    %20 = vector.shape_cast %19 : vector<1x1x16x4xbf16> to vector<16x4xbf16>
    %c2 = arith.constant 2 : index
    %c1_13 = arith.constant 1 : index
    %c0_14 = arith.constant 0 : index
    %21 = vector.load %arg6[%c2, %c1_13, %c0_14] : memref<10x18x4xbf16, #tpu.memory_space<vmem>>, vector<1x16x4xbf16>
    %22 = vector.shape_cast %21 : vector<1x16x4xbf16> to vector<16x4xbf16>
    %23 = vector.shape_cast %20 : vector<16x4xbf16> to vector<1x16x4xbf16>
    tpu.vector_store %arg6[%c2, %c1_13, %c0_14], %23 {strides = array<i32>} : memref<10x18x4xbf16, #tpu.memory_space<vmem>>, vector<1x16x4xbf16>,
    %c3_i32 = arith.constant 3 : i32
    %24 = arith.addi %3, %c3_i32 : i32
    %c0_15 = arith.constant 0 : index
    %25 = arith.index_cast %24 : i32 to index
    %c0_16 = arith.constant 0 : index
    %c0_17 = arith.constant 0 : index
    %26 = vector.load %arg2[%c0_15, %25, %c0_16, %c0_17] : memref<1x16x16x4xbf16, #tpu.memory_space<vmem>>, vector<1x1x16x4xbf16>
    %27 = vector.shape_cast %26 : vector<1x1x16x4xbf16> to vector<16x4xbf16>
    %c3 = arith.constant 3 : index
    %c1_18 = arith.constant 1 : index
    %c0_19 = arith.constant 0 : index
    %28 = vector.load %arg6[%c3, %c1_18, %c0_19] : memref<10x18x4xbf16, #tpu.memory_space<vmem>>, vector<1x16x4xbf16>
    %29 = vector.shape_cast %28 : vector<1x16x4xbf16> to vector<16x4xbf16>
    %30 = vector.shape_cast %27 : vector<16x4xbf16> to vector<1x16x4xbf16>
    tpu.vector_store %arg6[%c3, %c1_18, %c0_19], %30 {strides = array<i32>} : memref<10x18x4xbf16, #tpu.memory_space<vmem>>, vector<1x16x4xbf16>,
    %c4_i32 = arith.constant 4 : i32
    %31 = arith.addi %3, %c4_i32 : i32
    %c0_20 = arith.constant 0 : index
    %32 = arith.index_cast %31 : i32 to index
    %c0_21 = arith.constant 0 : index
    %c0_22 = arith.constant 0 : index
    %33 = vector.load %arg2[%c0_20, %32, %c0_21, %c0_22] : memref<1x16x16x4xbf16, #tpu.memory_space<vmem>>, vector<1x1x16x4xbf16>
    %34 = vector.shape_cast %33 : vector<1x1x16x4xbf16> to vector<16x4xbf16>
    %c4 = arith.constant 4 : index
    %c1_23 = arith.constant 1 : index
    %c0_24 = arith.constant 0 : index
    %35 = vector.load %arg6[%c4, %c1_23, %c0_24] : memref<10x18x4xbf16, #tpu.memory_space<vmem>>, vector<1x16x4xbf16>
    %36 = vector.shape_cast %35 : vector<1x16x4xbf16> to vector<16x4xbf16>
    %37 = vector.shape_cast %34 : vector<16x4xbf16> to vector<1x16x4xbf16>
    tpu.vector_store %arg6[%c4, %c1_23, %c0_24], %37 {strides = array<i32>} : memref<10x18x4xbf16, #tpu.memory_space<vmem>>, vector<1x16x4xbf16>,
    %c5_i32 = arith.constant 5 : i32
    %38 = arith.addi %3, %c5_i32 : i32
    %c0_25 = arith.constant 0 : index
    %39 = arith.index_cast %38 : i32 to index
    %c0_26 = arith.constant 0 : index
    %c0_27 = arith.constant 0 : index
    %40 = vector.load %arg2[%c0_25, %39, %c0_26, %c0_27] : memref<1x16x16x4xbf16, #tpu.memory_space<vmem>>, vector<1x1x16x4xbf16>
    %41 = vector.shape_cast %40 : vector<1x1x16x4xbf16> to vector<16x4xbf16>
    %c5 = arith.constant 5 : index
    %c1_28 = arith.constant 1 : index
    %c0_29 = arith.constant 0 : index
    %42 = vector.load %arg6[%c5, %c1_28, %c0_29] : memref<10x18x4xbf16, #tpu.memory_space<vmem>>, vector<1x16x4xbf16>
    %43 = vector.shape_cast %42 : vector<1x16x4xbf16> to vector<16x4xbf16>
    %44 = vector.shape_cast %41 : vector<16x4xbf16> to vector<1x16x4xbf16>
    tpu.vector_store %arg6[%c5, %c1_28, %c0_29], %44 {strides = array<i32>} : memref<10x18x4xbf16, #tpu.memory_space<vmem>>, vector<1x16x4xbf16>,
    %c6_i32 = arith.constant 6 : i32
    %45 = arith.addi %3, %c6_i32 : i32
    %c0_30 = arith.constant 0 : index
    %46 = arith.index_cast %45 : i32 to index
    %c0_31 = arith.constant 0 : index
    %c0_32 = arith.constant 0 : index
    %47 = vector.load %arg2[%c0_30, %46, %c0_31, %c0_32] : memref<1x16x16x4xbf16, #tpu.memory_space<vmem>>, vector<1x1x16x4xbf16>
    %48 = vector.shape_cast %47 : vector<1x1x16x4xbf16> to vector<16x4xbf16>
    %c6 = arith.constant 6 : index
    %c1_33 = arith.constant 1 : index
    %c0_34 = arith.constant 0 : index
    %49 = vector.load %arg6[%c6, %c1_33, %c0_34] : memref<10x18x4xbf16, #tpu.memory_space<vmem>>, vector<1x16x4xbf16>
    %50 = vector.shape_cast %49 : vector<1x16x4xbf16> to vector<16x4xbf16>
    %51 = vector.shape_cast %48 : vector<16x4xbf16> to vector<1x16x4xbf16>
    tpu.vector_store %arg6[%c6, %c1_33, %c0_34], %51 {strides = array<i32>} : memref<10x18x4xbf16, #tpu.memory_space<vmem>>, vector<1x16x4xbf16>,
    %c7_i32 = arith.constant 7 : i32
    %52 = arith.addi %3, %c7_i32 : i32
    %c0_35 = arith.constant 0 : index
    %53 = arith.index_cast %52 : i32 to index
    %c0_36 = arith.constant 0 : index
    %c0_37 = arith.constant 0 : index
    %54 = vector.load %arg2[%c0_35, %53, %c0_36, %c0_37] : memref<1x16x16x4xbf16, #tpu.memory_space<vmem>>, vector<1x1x16x4xbf16>
    %55 = vector.shape_cast %54 : vector<1x1x16x4xbf16> to vector<16x4xbf16>
    %c7 = arith.constant 7 : index
    %c1_38 = arith.constant 1 : index
    %c0_39 = arith.constant 0 : index
    %56 = vector.load %arg6[%c7, %c1_38, %c0_39] : memref<10x18x4xbf16, #tpu.memory_space<vmem>>, vector<1x16x4xbf16>
    %57 = vector.shape_cast %56 : vector<1x16x4xbf16> to vector<16x4xbf16>
    %58 = vector.shape_cast %55 : vector<16x4xbf16> to vector<1x16x4xbf16>
    tpu.vector_store %arg6[%c7, %c1_38, %c0_39], %58 {strides = array<i32>} : memref<10x18x4xbf16, #tpu.memory_space<vmem>>, vector<1x16x4xbf16>,
    %c8_i32_40 = arith.constant 8 : i32
    %59 = arith.addi %3, %c8_i32_40 : i32
    %c0_41 = arith.constant 0 : index
    %60 = arith.index_cast %59 : i32 to index
    %c0_42 = arith.constant 0 : index
    %c0_43 = arith.constant 0 : index
    %61 = vector.load %arg2[%c0_41, %60, %c0_42, %c0_43] : memref<1x16x16x4xbf16, #tpu.memory_space<vmem>>, vector<1x1x16x4xbf16>
    %62 = vector.shape_cast %61 : vector<1x1x16x4xbf16> to vector<16x4xbf16>
    %c8 = arith.constant 8 : index
    %c1_44 = arith.constant 1 : index
    %c0_45 = arith.constant 0 : index
    %63 = vector.load %arg6[%c8, %c1_44, %c0_45] : memref<10x18x4xbf16, #tpu.memory_space<vmem>>, vector<1x16x4xbf16>
    %64 = vector.shape_cast %63 : vector<1x16x4xbf16> to vector<16x4xbf16>
    %65 = vector.shape_cast %62 : vector<16x4xbf16> to vector<1x16x4xbf16>
    tpu.vector_store %arg6[%c8, %c1_44, %c0_45], %65 {strides = array<i32>} : memref<10x18x4xbf16, #tpu.memory_space<vmem>>, vector<1x16x4xbf16>,
    %c9_i32 = arith.constant 9 : i32
    %66 = arith.addi %3, %c9_i32 : i32
    %c0_i32_46 = arith.constant 0 : i32
    %67 = arith.cmpi sge, %66, %c0_i32_46 : i32
    %c16_i32_47 = arith.constant 16 : i32
    %68 = arith.cmpi slt, %66, %c16_i32_47 : i32
    %69 = arith.andi %67, %68 : i1
    %70 = arith.extui %69 : i1 to i32
    %c0_i32_48 = arith.constant 0 : i32
    %71 = arith.cmpi ne, %70, %c0_i32_48 : i32
    scf.if %71 {
      %c0_86 = arith.constant 0 : index
      %94 = arith.index_cast %66 : i32 to index
      %c0_87 = arith.constant 0 : index
      %c0_88 = arith.constant 0 : index
      %95 = vector.load %arg2[%c0_86, %94, %c0_87, %c0_88] : memref<1x16x16x4xbf16, #tpu.memory_space<vmem>>, vector<1x1x16x4xbf16>
      %96 = vector.shape_cast %95 : vector<1x1x16x4xbf16> to vector<16x4xbf16>
      %c9 = arith.constant 9 : index
      %c1_89 = arith.constant 1 : index
      %c0_90 = arith.constant 0 : index
      %97 = vector.load %arg6[%c9, %c1_89, %c0_90] : memref<10x18x4xbf16, #tpu.memory_space<vmem>>, vector<1x16x4xbf16>
      %98 = vector.shape_cast %97 : vector<1x16x4xbf16> to vector<16x4xbf16>
      %99 = vector.shape_cast %96 : vector<16x4xbf16> to vector<1x16x4xbf16>
      tpu.vector_store %arg6[%c9, %c1_89, %c0_90], %99 {strides = array<i32>} : memref<10x18x4xbf16, #tpu.memory_space<vmem>>, vector<1x16x4xbf16>,
    } else {
    }
    %c0_49 = arith.constant 0 : index
    %c0_50 = arith.constant 0 : index
    %c0_51 = arith.constant 0 : index
    %72 = vector.load %arg6[%c0_49, %c0_50, %c0_51] : memref<10x18x4xbf16, #tpu.memory_space<vmem>>, vector<8x16x4xbf16>
    %c0_52 = arith.constant 0 : index
    %c1_53 = arith.constant 1 : index
    %c0_54 = arith.constant 0 : index
    %73 = vector.load %arg6[%c0_52, %c1_53, %c0_54] : memref<10x18x4xbf16, #tpu.memory_space<vmem>>, vector<8x16x4xbf16>
    %c0_55 = arith.constant 0 : index
    %c2_56 = arith.constant 2 : index
    %c0_57 = arith.constant 0 : index
    %74 = vector.load %arg6[%c0_55, %c2_56, %c0_57] : memref<10x18x4xbf16, #tpu.memory_space<vmem>>, vector<8x16x4xbf16>
    %c1_58 = arith.constant 1 : index
    %c0_59 = arith.constant 0 : index
    %c0_60 = arith.constant 0 : index
    %75 = vector.load %arg6[%c1_58, %c0_59, %c0_60] : memref<10x18x4xbf16, #tpu.memory_space<vmem>>, vector<8x16x4xbf16>
    %c1_61 = arith.constant 1 : index
    %c1_62 = arith.constant 1 : index
    %c0_63 = arith.constant 0 : index
    %76 = vector.load %arg6[%c1_61, %c1_62, %c0_63] : memref<10x18x4xbf16, #tpu.memory_space<vmem>>, vector<8x16x4xbf16>
    %c1_64 = arith.constant 1 : index
    %c2_65 = arith.constant 2 : index
    %c0_66 = arith.constant 0 : index
    %77 = vector.load %arg6[%c1_64, %c2_65, %c0_66] : memref<10x18x4xbf16, #tpu.memory_space<vmem>>, vector<8x16x4xbf16>
    %c2_67 = arith.constant 2 : index
    %c0_68 = arith.constant 0 : index
    %c0_69 = arith.constant 0 : index
    %78 = vector.load %arg6[%c2_67, %c0_68, %c0_69] : memref<10x18x4xbf16, #tpu.memory_space<vmem>>, vector<8x16x4xbf16>
    %c2_70 = arith.constant 2 : index
    %c1_71 = arith.constant 1 : index
    %c0_72 = arith.constant 0 : index
    %79 = vector.load %arg6[%c2_70, %c1_71, %c0_72] : memref<10x18x4xbf16, #tpu.memory_space<vmem>>, vector<8x16x4xbf16>
    %c2_73 = arith.constant 2 : index
    %c2_74 = arith.constant 2 : index
    %c0_75 = arith.constant 0 : index
    %80 = vector.load %arg6[%c2_73, %c2_74, %c0_75] : memref<10x18x4xbf16, #tpu.memory_space<vmem>>, vector<8x16x4xbf16>
    %81 = tpu.concatenate %72, %73, %74, %75, %76, %77, %78, %79, %80 in 2 : vector<8x16x4xbf16>, vector<8x16x4xbf16>, vector<8x16x4xbf16>, vector<8x16x4xbf16>, vector<8x16x4xbf16>, vector<8x16x4xbf16>, vector<8x16x4xbf16>, vector<8x16x4xbf16>, vector<8x16x4xbf16> -> vector<8x16x36xbf16>
    %82 = vector.shape_cast %81 : vector<8x16x36xbf16> to vector<128x36xbf16>
    %c0_76 = arith.constant 0 : index
    %c0_77 = arith.constant 0 : index
    %83 = vector.load %arg3[%c0_76, %c0_77] : memref<36x8xbf16, #tpu.memory_space<vmem>>, vector<36x8xbf16>
    %cst_78 = arith.constant dense<0.000000e+00> : vector<128x8xf32>
    %84 = tpu.matmul %82, %83, %cst_78 {dimension_numbers = #tpu.dot_dimension_numbers<[1], [0], [0], [1], [0, 0, 1, 1], [], []>} : vector<128x36xbf16>, vector<36x8xbf16>, vector<128x8xf32> -> vector<128x8xf32>
    %c0_79 = arith.constant 0 : index
    %c0_80 = arith.constant 0 : index
    %85 = vector.load %arg4[%c0_79, %c0_80] : memref<1x8xf32, #tpu.memory_space<vmem>>, vector<1x8xf32>
    %86 = vector.broadcast %85 : vector<1x8xf32> to vector<128x8xf32>
    %87 = arith.addf %84, %86 : vector<128x8xf32>
    %cst_81 = arith.constant 0.000000e+00 : f32
    %88 = vector.broadcast %cst_81 : f32 to vector<128x8xf32>
    %89 = arith.maximumf %87, %88 : vector<128x8xf32>
    %90 = vector.shape_cast %89 : vector<128x8xf32> to vector<8x16x8xf32>
    %c0_82 = arith.constant 0 : index
    %c0_83 = arith.constant 0 : index
    %c0_84 = arith.constant 0 : index
    %c0_85 = arith.constant 0 : index
    %91 = vector.load %arg5[%c0_82, %c0_83, %c0_84, %c0_85] : memref<1x8x16x8xf32, #tpu.memory_space<vmem>>, vector<1x8x16x8xf32>
    %92 = vector.shape_cast %91 : vector<1x8x16x8xf32> to vector<8x16x8xf32>
    %93 = vector.shape_cast %90 : vector<8x16x8xf32> to vector<1x8x16x8xf32>
    tpu.vector_store %arg5[%c0_82, %c0_83, %c0_84, %c0_85], %93 {strides = array<i32>} : memref<1x8x16x8xf32, #tpu.memory_space<vmem>>, vector<1x8x16x8xf32>,
    return
  }
  func.func @transform_0(%arg0: i32, %arg1: i32) -> (i32, i32, i32, i32) {
    %c0_i32 = arith.constant 0 : i32
    %c0_i32_0 = arith.constant 0 : i32
    %c0_i32_1 = arith.constant 0 : i32
    %c0_i32_2 = arith.constant 0 : i32
    return %arg0, %c0_i32, %c0_i32_0, %c0_i32_1 : i32, i32, i32, i32
  }
  func.func @transform_1(%arg0: i32, %arg1: i32) -> (i32, i32) {
    %c0_i32 = arith.constant 0 : i32
    %c0_i32_0 = arith.constant 0 : i32
    %c0_i32_1 = arith.constant 0 : i32
    return %c0_i32, %c0_i32_0 : i32, i32
  }
  func.func @transform_2(%arg0: i32, %arg1: i32) -> (i32, i32) {
    %c0_i32 = arith.constant 0 : i32
    %c0_i32_0 = arith.constant 0 : i32
    %c0_i32_1 = arith.constant 0 : i32
    return %c0_i32, %c0_i32_0 : i32, i32
  }
  func.func @transform_3(%arg0: i32, %arg1: i32) -> (i32, i32, i32, i32) {
    %c0_i32 = arith.constant 0 : i32
    %c0_i32_0 = arith.constant 0 : i32
    %c0_i32_1 = arith.constant 0 : i32
    return %arg0, %arg1, %c0_i32, %c0_i32_0 : i32, i32, i32, i32
  }
}

</mosaic_0001>

<llo_original>
// kernel: tpu_custom_call.1
$region0: #{tpu_custom_call.1}
  #allocation0 [shape = 'u32[]', space=smem, size = 0x4, offset = 0x4, fixed_abs, tag = 'smem constant byte address 0x4 - core index']
  #allocation1 [shape = 'u32[144,128]{1,0:T(1,128)}', space=vmem, size = 0x12000, scoped, tag = 'internal scratch']
  #allocation2 [shape = 'bf16[10,18,4]{2,1,0:T(8,128)(2,1)}', space=vmem, size = 0xf000, scoped, tag = 'scratch operand']
  %s0 = inlined_call_operand.vmem [shape: bf16[2,16,16,4], index: 0, kind: input, shape index: {}]
  %s1 = inlined_call_operand.vmem [shape: bf16[36,8], index: 1, kind: input, shape index: {}]
  %s2 = inlined_call_operand.vmem [shape: f32[1,8], index: 2, kind: input, shape index: {}]
  %s3 = inlined_call_operand.vmem [shape: f32[2,16,16,8], index: 3, kind: output, shape index: {}]
  %s4 = sld [smem:[#allocation0]]
  $region53: #{tpu_custom_call.1} parent=0
    _
  %s6 = ssub.s32 1, %s4
  %s7 = scalar_select 0, %s6, %s4
  loop: start=0, step=1, limit=6
  $region2: #{tpu_custom_call.1} parent=0 // loop_pre_header
    _
  $region3: #{tpu_custom_call.1} parent=0 // loop_header
    %s9 = sphi 0, %s13
    %p10 = scmp.ge.s32.totalorder %s9, 6
    %s16 = sphi 0, %s28
    %s17 = sphi 0, %s24
    %s18 = sphi 0, %s16
    %s19 = sphi 0, %s17
    %s20 = sphi 0, %s18
    %s21 = sphi 0, %s19
    %s31 = sphi 0, %s33
    %s34 = sphi 0, %s31
    %s35 = sphi 0, %s34
    %s51 = sphi 0, %s35
    %s55 = sphi 0, %s55
    %s57 = sphi 0, %s55
    %s58 = sphi 0, %s57
    %s72 = sphi 0, %s58
    %s76 = sphi 0, %s76
    %s78 = sphi 0, %s76
    %s79 = sphi 0, %s78
    %s93 = sphi 0, %s79
    %s101 = sphi 0, %s103
    %s104 = sphi 0, %s101
    %s105 = sphi 0, %s104
    %s121 = sphi 0, %s105
  $region4: #{tpu_custom_call.1} parent=0 // loop_header_branch
    %12 = sbr.rel (%p10) target = $region8
  $region5: #{tpu_custom_call.1} parent=0 // loop_body
    %s14 = ssub.s32 %s9, 1
    %s15 = ssub.s32 %s9, 2
    %s22 = sadd.s32 1, %s17
    %p23 = scmp.ge.s32.totalorder %s22, 2
    %s24 = scalar_select %p23, 0, %s22
    %s25 = sadd.s32 1, %s16
    %s26 = scalar_select %p23, %s25, %s16
    %p27 = scmp.ge.s32.totalorder %s26, 2
    %s28 = scalar_select %p27, 0, %s26
    %s29 = ssub.s32 %s16, %s28
    %p30 = scmp.eq.s32.totalorder %s29, 0
    %s32 = sadd.s32 %s31, 1
    %s33 = scalar_select %p30, %s31, %s32
    %p36 = pneg %p30
    %p37 = scmp.eq.s32.totalorder %s9, 3
    %p38 = por %p36, %p37
    %p39 = scmp.ne.s32.totalorder %s31, %s34
    %p40 = scmp.eq.s32.totalorder %s9, 0
    %p41 = por %p39, %p40
    %p42 = scmp.ne.s32.totalorder %s31, %s34
    %p43 = scmp.eq.s32.totalorder %s14, 3
    %p44 = por %p42, %p43
    %p45 = scmp.ne.s32.totalorder %s34, %s35
    %p46 = scmp.eq.s32.totalorder %s14, 0
    %p47 = por %p45, %p46
    %p48 = scmp.ne.s32.totalorder %s34, %s35
    %p49 = scmp.eq.s32.totalorder %s15, 3
    %p50 = por %p48, %p49
    %p52 = scmp.ne.s32.totalorder %s35, %s51
    %p53 = scmp.eq.s32.totalorder %s15, 0
    %p54 = por %p52, %p53
    %s56 = sadd.s32 %s55, 1
    %p59 = scmp.eq.s32.totalorder %s9, 3
    %p60 = scmp.ne.s32.totalorder %s55, %s57
    %p61 = scmp.eq.s32.totalorder %s9, 0
    %p62 = por %p60, %p61
    %p63 = scmp.ne.s32.totalorder %s55, %s57
    %p64 = scmp.eq.s32.totalorder %s14, 3
    %p65 = por %p63, %p64
    %p66 = scmp.ne.s32.totalorder %s57, %s58
    %p67 = scmp.eq.s32.totalorder %s14, 0
    %p68 = por %p66, %p67
    %p69 = scmp.ne.s32.totalorder %s57, %s58
    %p70 = scmp.eq.s32.totalorder %s15, 3
    %p71 = por %p69, %p70
    %p73 = scmp.ne.s32.totalorder %s58, %s72
    %p74 = scmp.eq.s32.totalorder %s15, 0
    %p75 = por %p73, %p74
    %s77 = sadd.s32 %s76, 1
    %p80 = scmp.eq.s32.totalorder %s9, 3
    %p81 = scmp.ne.s32.totalorder %s76, %s78
    %p82 = scmp.eq.s32.totalorder %s9, 0
    %p83 = por %p81, %p82
    %p84 = scmp.ne.s32.totalorder %s76, %s78
    %p85 = scmp.eq.s32.totalorder %s14, 3
    %p86 = por %p84, %p85
    %p87 = scmp.ne.s32.totalorder %s78, %s79
    %p88 = scmp.eq.s32.totalorder %s14, 0
    %p89 = por %p87, %p88
    %p90 = scmp.ne.s32.totalorder %s78, %s79
    %p91 = scmp.eq.s32.totalorder %s15, 3
    %p92 = por %p90, %p91
    %p94 = scmp.ne.s32.totalorder %s79, %s93
    %p95 = scmp.eq.s32.totalorder %s15, 0
    %p96 = por %p94, %p95
    %s97 = ssub.s32 %s16, %s28
    %s98 = ssub.s32 %s17, %s24
    %s99 = sor.u32 %s97, %s98
    %p100 = scmp.eq.s32.totalorder %s99, 0
    %s102 = sadd.s32 %s101, 1
    %s103 = scalar_select %p100, %s101, %s102
    %p106 = pneg %p100
    %p107 = scmp.eq.s32.totalorder %s9, 3
    %p108 = por %p106, %p107
    %p109 = scmp.ne.s32.totalorder %s101, %s104
    %p110 = scmp.eq.s32.totalorder %s9, 0
    %p111 = por %p109, %p110
    %p112 = scmp.ne.s32.totalorder %s101, %s104
    %p113 = scmp.eq.s32.totalorder %s14, 3
    %p114 = por %p112, %p113
    %p115 = scmp.ne.s32.totalorder %s104, %s105
    %p116 = scmp.eq.s32.totalorder %s14, 0
    %p117 = por %p115, %p116
    %p118 = scmp.ne.s32.totalorder %s104, %s105
    %p119 = scmp.eq.s32.totalorder %s15, 3
    %p120 = por %p118, %p119
    %p122 = scmp.ne.s32.totalorder %s105, %s121
    %p123 = scmp.eq.s32.totalorder %s15, 0
    %p124 = por %p122, %p123
    %p125 = scmp.le.s32.totalorder 1, %s9
    %p126 = scmp.lt.s32.totalorder %s9, 5
    %p127 = pnand %p125, %p126
    %p128 = pneg %p127
    // Predicated region
    $region9: #{tpu_custom_call.1} parent=5 // pred_check
      _
    $region10: #{tpu_custom_call.1} parent=5 // pred_check_branch
      %130 = sbr.rel (%p127) target = $region12
    $region11: #{tpu_custom_call.1} parent=5 // pred_region
      %s131 = ssub.s32 %s9, 1
      // Predicated region
      $region13: #{tpu_custom_call.1} parent=11 // pred_check
        %p132 = pneg %p68
      $region14: #{tpu_custom_call.1} parent=11 // pred_check_branch
        %134 = sbr.rel (%p132) target = $region16
      $region15: #{tpu_custom_call.1} parent=11 // pred_region
        _
      $region16: #{tpu_custom_call.1} parent=11 // pred_fallthru
        _
      // Predicated region
      $region17: #{tpu_custom_call.1} parent=11 // pred_check
        %p135 = pneg %p89
      $region18: #{tpu_custom_call.1} parent=11 // pred_check_branch
        %137 = sbr.rel (%p135) target = $region20
      $region19: #{tpu_custom_call.1} parent=11 // pred_region
        _
      $region20: #{tpu_custom_call.1} parent=11 // pred_fallthru
        _
    $region12: #{tpu_custom_call.1} parent=5 // pred_fallthru
      _
    %p138 = scmp.lt.s32.totalorder %s9, 4
    // Predicated region
    $region21: #{tpu_custom_call.1} parent=5 // pred_check
      %p139 = pneg %p138
    $region22: #{tpu_custom_call.1} parent=5 // pred_check_branch
      %141 = sbr.rel (%p139) target = $region24
    $region23: #{tpu_custom_call.1} parent=5 // pred_region
      // Predicated region
      $region25: #{tpu_custom_call.1} parent=23 // pred_check
        %p142 = pneg %p41
      $region26: #{tpu_custom_call.1} parent=23 // pred_check_branch
        %144 = sbr.rel (%p142) target = $region28
      $region27: #{tpu_custom_call.1} parent=23 // pred_region
        %p145 = scmp.lt.s32.totalorder %s16, 1
        %s146 = scalar_select %p145, %s16, 1
        %s147 = smul.addr %s146, 32
        %s148 = smul.addr %s147, 4
        %s149 = scalar_lea.vmem %s0, %s148
      $region28: #{tpu_custom_call.1} parent=23 // pred_fallthru
        _
    $region24: #{tpu_custom_call.1} parent=5 // pred_fallthru
      _
    %p150 = scmp.le.s32.totalorder 1, %s9
    %p151 = scmp.lt.s32.totalorder %s9, 5
    %p152 = pnand %p150, %p151
    %p153 = pneg %p152
    // Predicated region
    $region29: #{tpu_custom_call.1} parent=5 // pred_check
      _
    $region30: #{tpu_custom_call.1} parent=5 // pred_check_branch
      %155 = sbr.rel (%p152) target = $region32
    $region31: #{tpu_custom_call.1} parent=5 // pred_region
      %s156 = ssub.s32 %s9, 1
      %p157 = scmp.lt.s32.totalorder %s18, 1
      %s158 = scalar_select %p157, %s18, 1
      %s159 = smul.addr %s158, 32
      %s160 = smul.addr %s159, 4
      %s161 = scalar_lea.vmem %s0, %s160
      %p162 = pneg %p47
      %p163 = pneg %p44
      %p164 = pneg %p68
      %p165 = pneg %p65
      %p166 = pneg %p89
      %p167 = pneg %p86
      %p168 = pneg %p117
      %p169 = pneg %p114
      %s170 = smul.u32 8, %s19
      %p171 = scmp.lt.s32.totalorder %s18, 1
      %s172 = scalar_select %p171, %s18, 1
      %p173 = scmp.lt.s32.totalorder %s170, 15
      %s174 = scalar_select %p173, %s170, 15
      %s175 = smul.addr %s174, 2
      %s176 = smul.addr %s172, 32
      %s177 = sadd.s32 %s175, %s176
      %s178 = smul.addr %s177, 8
      %s179 = scalar_lea.vmem %s3, %s178
      %p180 = scmp.lt.s32.totalorder %s18, 1
      %s181 = scalar_select %p180, %s18, 1
      %s182 = smul.addr %s181, 32
      %s183 = smul.addr %s182, 4
      %s184 = scalar_lea.vmem %s0, %s183
      %s185 = smul.u32 8, %s19
      %p186 = scmp.lt.s32.totalorder %s18, 1
      %s187 = scalar_select %p186, %s18, 1
      %p188 = scmp.lt.s32.totalorder %s185, 15
      %s189 = scalar_select %p188, %s185, 15
      %s190 = smul.addr %s189, 2
      %s191 = smul.addr %s187, 32
      %s192 = sadd.s32 %s190, %s191
      %s193 = smul.addr %s192, 8
      %s194 = scalar_lea.vmem %s3, %s193
      %s195 = smul.u32 8, %s19
      %vm197 = vcmask 27648
      %198 = vst.msk [vmem:[#allocation2] sm:$0xf] %vm197, 0
      %199 = vst.msk [vmem:[#allocation2 + $0x4] sm:$0xf] %vm197, 0
      %vm200 = vcmask 24576
      %201 = vst.msk [vmem:[#allocation2 + $0x8] sm:$0x1] %vm200, 0
      %202 = vst.msk [vmem:[#allocation2 + $0xc] sm:$0xf] %vm197, 0
      %203 = vst.msk [vmem:[#allocation2 + $0x10] sm:$0xf] %vm197, 0
      %204 = vst.msk [vmem:[#allocation2 + $0x14] sm:$0x1] %vm200, 0
      %205 = vst.msk [vmem:[#allocation2 + $0x18] sm:$0xf] %vm197, 0
      %206 = vst.msk [vmem:[#allocation2 + $0x1c] sm:$0xf] %vm197, 0
      %207 = vst.msk [vmem:[#allocation2 + $0x20] sm:$0x1] %vm200, 0
      %208 = vst.msk [vmem:[#allocation2 + $0x24] sm:$0xf] %vm197, 0
      %209 = vst.msk [vmem:[#allocation2 + $0x28] sm:$0xf] %vm197, 0
      %210 = vst.msk [vmem:[#allocation2 + $0x2c] sm:$0x1] %vm200, 0
      %211 = vst.msk [vmem:[#allocation2 + $0x30] sm:$0xf] %vm197, 0
      %212 = vst.msk [vmem:[#allocation2 + $0x34] sm:$0xf] %vm197, 0
      %213 = vst.msk [vmem:[#allocation2 + $0x38] sm:$0x1] %vm200, 0
      %214 = vst.msk [vmem:[#allocation2 + $0x3c] sm:$0xf] %vm197, 0
      %215 = vst.msk [vmem:[#allocation2 + $0x40] sm:$0xf] %vm197, 0
      %216 = vst.msk [vmem:[#allocation2 + $0x44] sm:$0x1] %vm200, 0
      %217 = vst.msk [vmem:[#allocation2 + $0x48] sm:$0xf] %vm197, 0
      %218 = vst.msk [vmem:[#allocation2 + $0x4c] sm:$0xf] %vm197, 0
      %219 = vst.msk [vmem:[#allocation2 + $0x50] sm:$0x1] %vm200, 0
      %220 = vst.msk [vmem:[#allocation2 + $0x54] sm:$0xf] %vm197, 0
      %221 = vst.msk [vmem:[#allocation2 + $0x58] sm:$0xf] %vm197, 0
      %222 = vst.msk [vmem:[#allocation2 + $0x5c] sm:$0x1] %vm200, 0
      %223 = vst.msk [vmem:[#allocation2 + $0x60] sm:$0xf] %vm197, 0
      %224 = vst.msk [vmem:[#allocation2 + $0x64] sm:$0xf] %vm197, 0
      %225 = vst.msk [vmem:[#allocation2 + $0x68] sm:$0x1] %vm200, 0
      %226 = vst.msk [vmem:[#allocation2 + $0x6c] sm:$0xf] %vm197, 0
      %227 = vst.msk [vmem:[#allocation2 + $0x70] sm:$0xf] %vm197, 0
      %228 = vst.msk [vmem:[#allocation2 + $0x74] sm:$0x1] %vm200, 0
      %s229 = smul.u32 %s19, 8
      %s230 = ssub.s32 %s229, 1
      %p231 = scmp.ge.s32.totalorder %s230, 0
      %p232 = scmp.lt.s32.totalorder %s230, 16
      %p233 = pnand %p231, %p232
      %p234 = pneg %p233
      // Predicated region
      $region33: #{tpu_custom_call.1} parent=31 // pred_check
        _
      $region34: #{tpu_custom_call.1} parent=31 // pred_check_branch
        %236 = sbr.rel (%p233) target = $region36
      $region35: #{tpu_custom_call.1} parent=31 // pred_region
        %s237 = smul.u32 %s230, 2
        %s238 = smul.addr %s237, 4
        %s239 = scalar_lea.vmem %s184, %s238
        %v240 = vld [vmem:[%s239] sm:$0xf]
        %v241 = vld [vmem:[%s239 + $0x4] sm:$0xf]
        %vm242 = vsmask.f32 256
        %vm243 = vsmask.f32 4368
        %vm244 = vmor %vm242, %vm243
        %v246 = vshrl.u32 %v240, 16
        %v248 = vrot.slane %v246, 7
        %v249 = vshll.u32 %v240, 16
        %v251 = vor.u32 %v248, %v249
        %v252 = vrot.slane %v248, 4
        %v254 = vshrl.u32 %v241, 16
        %v256 = vrot.slane %v254, 7
        %v257 = vshll.u32 %v241, 16
        %v259 = vor.u32 %v256, %v257
        %v260 = vsel %vm244, %v252, %v259
        %v261 = vrot.slane %v256, 4
        %vm265 = vcmask 27648
        %vm266 = vsmask.f32 7938
        %vm267 = vmand %vm265, %vm266
        %v268 = vld [vmem:[#allocation2] sm:$0xf]
        %v269 = vsel %vm267, %v251, %v268
        %270 = vst [vmem:[#allocation2] sm:$0xf] %v269
        %271 = vst.msk [vmem:[#allocation2 + $0x4] sm:$0xf] %vm197, %v260
        %vm272 = vcmask 24576
        %vm273 = vmand %vm272, %vm242
        %v274 = vld [vmem:[#allocation2 + $0x8] sm:$0x1]
        %v275 = vsel %vm273, %v261, %v274
        %276 = vst [vmem:[#allocation2 + $0x8] sm:$0x1] %v275
      $region36: #{tpu_custom_call.1} parent=31 // pred_fallthru
        _
      %s277 = smul.u32 %s229, 2
      %s278 = smul.addr %s277, 4
      %s279 = scalar_lea.vmem %s184, %s278
      %v280 = vld [vmem:[%s279] sm:$0xf]
      %v281 = vld [vmem:[%s279 + $0x4] sm:$0xf]
      %vm282 = vsmask.f32 256
      %vm283 = vsmask.f32 4368
      %vm284 = vmor %vm282, %vm283
      %v286 = vshrl.u32 %v280, 16
      %v288 = vrot.slane %v286, 7
      %v289 = vshll.u32 %v280, 16
      %v291 = vor.u32 %v288, %v289
      %v292 = vrot.slane %v288, 4
      %v294 = vshrl.u32 %v281, 16
      %v296 = vrot.slane %v294, 7
      %v297 = vshll.u32 %v281, 16
      %v299 = vor.u32 %v296, %v297
      %v300 = vsel %vm284, %v292, %v299
      %v301 = vrot.slane %v296, 4
      %s305 = scalar_lea.vmem [#allocation2], 12
      %vm306 = vcmask 27648
      %vm307 = vsmask.f32 7938
      %vm308 = vmand %vm306, %vm307
      %v309 = vld [vmem:[%s305] sm:$0xf]
      %v310 = vsel %vm308, %v291, %v309
      %311 = vst [vmem:[%s305] sm:$0xf] %v310
      %312 = vst.msk [vmem:[%s305 + $0x4] sm:$0xf] %vm197, %v300
      %vm313 = vcmask 24576
      %vm314 = vmand %vm313, %vm282
      %v315 = vld [vmem:[%s305 + $0x8] sm:$0x1]
      %v316 = vsel %vm314, %v301, %v315
      %317 = vst [vmem:[%s305 + $0x8] sm:$0x1] %v316
      %s318 = sadd.s32 %s229, 1
      %s319 = smul.u32 %s318, 2
      %s320 = smul.addr %s319, 4
      %s321 = scalar_lea.vmem %s184, %s320
      %v322 = vld [vmem:[%s321] sm:$0xf]
      %v323 = vld [vmem:[%s321 + $0x4] sm:$0xf]
      %v325 = vshrl.u32 %v322, 16
      %v327 = vrot.slane %v325, 7
      %v328 = vshll.u32 %v322, 16
      %v330 = vor.u32 %v327, %v328
      %v331 = vrot.slane %v327, 4
      %v333 = vshrl.u32 %v323, 16
      %v335 = vrot.slane %v333, 7
      %v336 = vshll.u32 %v323, 16
      %v338 = vor.u32 %v335, %v336
      %v339 = vsel %vm284, %v331, %v338
      %v340 = vrot.slane %v335, 4
      %s344 = scalar_lea.vmem [#allocation2], 24
      %v345 = vld [vmem:[%s344] sm:$0xf]
      %v346 = vsel %vm308, %v330, %v345
      %347 = vst [vmem:[%s344] sm:$0xf] %v346
      %348 = vst.msk [vmem:[%s344 + $0x4] sm:$0xf] %vm197, %v339
      %v349 = vld [vmem:[%s344 + $0x8] sm:$0x1]
      %v350 = vsel %vm314, %v340, %v349
      %351 = vst [vmem:[%s344 + $0x8] sm:$0x1] %v350
      %s352 = sadd.s32 %s229, 2
      %s353 = smul.u32 %s352, 2
      %s354 = smul.addr %s353, 4
      %s355 = scalar_lea.vmem %s184, %s354
      %v356 = vld [vmem:[%s355] sm:$0xf]
      %v357 = vld [vmem:[%s355 + $0x4] sm:$0xf]
      %v359 = vshrl.u32 %v356, 16
      %v361 = vrot.slane %v359, 7
      %v362 = vshll.u32 %v356, 16
      %v364 = vor.u32 %v361, %v362
      %v365 = vrot.slane %v361, 4
      %v367 = vshrl.u32 %v357, 16
      %v369 = vrot.slane %v367, 7
      %v370 = vshll.u32 %v357, 16
      %v372 = vor.u32 %v369, %v370
      %v373 = vsel %vm284, %v365, %v372
      %v374 = vrot.slane %v369, 4
      %s378 = scalar_lea.vmem [#allocation2], 36
      %v379 = vld [vmem:[%s378] sm:$0xf]
      %v380 = vsel %vm308, %v364, %v379
      %381 = vst [vmem:[%s378] sm:$0xf] %v380
      %382 = vst.msk [vmem:[%s378 + $0x4] sm:$0xf] %vm197, %v373
      %v383 = vld [vmem:[%s378 + $0x8] sm:$0x1]
      %v384 = vsel %vm314, %v374, %v383
      %385 = vst [vmem:[%s378 + $0x8] sm:$0x1] %v384
      %s386 = sadd.s32 %s229, 3
      %s387 = smul.u32 %s386, 2
      %s388 = smul.addr %s387, 4
      %s389 = scalar_lea.vmem %s184, %s388
      %v390 = vld [vmem:[%s389] sm:$0xf]
      %v391 = vld [vmem:[%s389 + $0x4] sm:$0xf]
      %v393 = vshrl.u32 %v390, 16
      %v395 = vrot.slane %v393, 7
      %v396 = vshll.u32 %v390, 16
      %v398 = vor.u32 %v395, %v396
      %v399 = vrot.slane %v395, 4
      %v401 = vshrl.u32 %v391, 16
      %v403 = vrot.slane %v401, 7
      %v404 = vshll.u32 %v391, 16
      %v406 = vor.u32 %v403, %v404
      %v407 = vsel %vm284, %v399, %v406
      %v408 = vrot.slane %v403, 4
      %s412 = scalar_lea.vmem [#allocation2], 48
      %v413 = vld [vmem:[%s412] sm:$0xf]
      %v414 = vsel %vm308, %v398, %v413
      %415 = vst [vmem:[%s412] sm:$0xf] %v414
      %416 = vst.msk [vmem:[%s412 + $0x4] sm:$0xf] %vm197, %v407
      %v417 = vld [vmem:[%s412 + $0x8] sm:$0x1]
      %v418 = vsel %vm314, %v408, %v417
      %419 = vst [vmem:[%s412 + $0x8] sm:$0x1] %v418
      %s420 = sadd.s32 %s229, 4
      %s421 = smul.u32 %s420, 2
      %s422 = smul.addr %s421, 4
      %s423 = scalar_lea.vmem %s184, %s422
      %v424 = vld [vmem:[%s423] sm:$0xf]
      %v425 = vld [vmem:[%s423 + $0x4] sm:$0xf]
      %v427 = vshrl.u32 %v424, 16
      %v429 = vrot.slane %v427, 7
      %v430 = vshll.u32 %v424, 16
      %v432 = vor.u32 %v429, %v430
      %v433 = vrot.slane %v429, 4
      %v435 = vshrl.u32 %v425, 16
      %v437 = vrot.slane %v435, 7
      %v438 = vshll.u32 %v425, 16
      %v440 = vor.u32 %v437, %v438
      %v441 = vsel %vm284, %v433, %v440
      %v442 = vrot.slane %v437, 4
      %s446 = scalar_lea.vmem [#allocation2], 60
      %v447 = vld [vmem:[%s446] sm:$0xf]
      %v448 = vsel %vm308, %v432, %v447
      %449 = vst [vmem:[%s446] sm:$0xf] %v448
      %450 = vst.msk [vmem:[%s446 + $0x4] sm:$0xf] %vm197, %v441
      %v451 = vld [vmem:[%s446 + $0x8] sm:$0x1]
      %v452 = vsel %vm314, %v442, %v451
      %453 = vst [vmem:[%s446 + $0x8] sm:$0x1] %v452
      %s454 = sadd.s32 %s229, 5
      %s455 = smul.u32 %s454, 2
      %s456 = smul.addr %s455, 4
      %s457 = scalar_lea.vmem %s184, %s456
      %v458 = vld [vmem:[%s457] sm:$0xf]
      %v459 = vld [vmem:[%s457 + $0x4] sm:$0xf]
      %v461 = vshrl.u32 %v458, 16
      %v463 = vrot.slane %v461, 7
      %v464 = vshll.u32 %v458, 16
      %v466 = vor.u32 %v463, %v464
      %v467 = vrot.slane %v463, 4
      %v469 = vshrl.u32 %v459, 16
      %v471 = vrot.slane %v469, 7
      %v472 = vshll.u32 %v459, 16
      %v474 = vor.u32 %v471, %v472
      %v475 = vsel %vm284, %v467, %v474
      %v476 = vrot.slane %v471, 4
      %s480 = scalar_lea.vmem [#allocation2], 72
      %v481 = vld [vmem:[%s480] sm:$0xf]
      %v482 = vsel %vm308, %v466, %v481
      %483 = vst [vmem:[%s480] sm:$0xf] %v482
      %484 = vst.msk [vmem:[%s480 + $0x4] sm:$0xf] %vm197, %v475
      %v485 = vld [vmem:[%s480 + $0x8] sm:$0x1]
      %v486 = vsel %vm314, %v476, %v485
      %487 = vst [vmem:[%s480 + $0x8] sm:$0x1] %v486
      %s488 = sadd.s32 %s229, 6
      %s489 = smul.u32 %s488, 2
      %s490 = smul.addr %s489, 4
      %s491 = scalar_lea.vmem %s184, %s490
      %v492 = vld [vmem:[%s491] sm:$0xf]
      %v493 = vld [vmem:[%s491 + $0x4] sm:$0xf]
      %v495 = vshrl.u32 %v492, 16
      %v497 = vrot.slane %v495, 7
      %v498 = vshll.u32 %v492, 16
      %v500 = vor.u32 %v497, %v498
      %v501 = vrot.slane %v497, 4
      %v503 = vshrl.u32 %v493, 16
      %v505 = vrot.slane %v503, 7
      %v506 = vshll.u32 %v493, 16
      %v508 = vor.u32 %v505, %v506
      %v509 = vsel %vm284, %v501, %v508
      %v510 = vrot.slane %v505, 4
      %s514 = scalar_lea.vmem [#allocation2], 84
      %v515 = vld [vmem:[%s514] sm:$0xf]
      %v516 = vsel %vm308, %v500, %v515
      %517 = vst [vmem:[%s514] sm:$0xf] %v516
      %518 = vst.msk [vmem:[%s514 + $0x4] sm:$0xf] %vm197, %v509
      %v519 = vld [vmem:[%s514 + $0x8] sm:$0x1]
      %v520 = vsel %vm314, %v510, %v519
      %521 = vst [vmem:[%s514 + $0x8] sm:$0x1] %v520
      %s522 = sadd.s32 %s229, 7
      %s523 = smul.u32 %s522, 2
      %s524 = smul.addr %s523, 4
      %s525 = scalar_lea.vmem %s184, %s524
      %v526 = vld [vmem:[%s525] sm:$0xf]
      %v527 = vld [vmem:[%s525 + $0x4] sm:$0xf]
      %v529 = vshrl.u32 %v526, 16
      %v531 = vrot.slane %v529, 7
      %v532 = vshll.u32 %v526, 16
      %v534 = vor.u32 %v531, %v532
      %v535 = vrot.slane %v531, 4
      %v537 = vshrl.u32 %v527, 16
      %v539 = vrot.slane %v537, 7
      %v540 = vshll.u32 %v527, 16
      %v542 = vor.u32 %v539, %v540
      %v543 = vsel %vm284, %v535, %v542
      %v544 = vrot.slane %v539, 4
      %s548 = scalar_lea.vmem [#allocation2], 96
      %v549 = vld [vmem:[%s548] sm:$0xf]
      %v550 = vsel %vm308, %v534, %v549
      %551 = vst [vmem:[%s548] sm:$0xf] %v550
      %552 = vst.msk [vmem:[%s548 + $0x4] sm:$0xf] %vm197, %v543
      %v553 = vld [vmem:[%s548 + $0x8] sm:$0x1]
      %v554 = vsel %vm314, %v544, %v553
      %555 = vst [vmem:[%s548 + $0x8] sm:$0x1] %v554
      %s556 = sadd.s32 %s229, 8
      %p557 = scmp.ge.s32.totalorder %s556, 0
      %p558 = scmp.lt.s32.totalorder %s556, 16
      %p559 = pnand %p557, %p558
      %p560 = pneg %p559
      // Predicated region
      $region37: #{tpu_custom_call.1} parent=31 // pred_check
        _
      $region38: #{tpu_custom_call.1} parent=31 // pred_check_branch
        %562 = sbr.rel (%p559) target = $region40
      $region39: #{tpu_custom_call.1} parent=31 // pred_region
        %s563 = smul.u32 %s556, 2
        %s564 = smul.addr %s563, 4
        %s565 = scalar_lea.vmem %s184, %s564
        %v566 = vld [vmem:[%s565] sm:$0xf]
        %v567 = vld [vmem:[%s565 + $0x4] sm:$0xf]
        %v569 = vshrl.u32 %v566, 16
        %v571 = vrot.slane %v569, 7
        %v572 = vshll.u32 %v566, 16
        %v574 = vor.u32 %v571, %v572
        %v575 = vrot.slane %v571, 4
        %v577 = vshrl.u32 %v567, 16
        %v579 = vrot.slane %v577, 7
        %v580 = vshll.u32 %v567, 16
        %v582 = vor.u32 %v579, %v580
        %v583 = vsel %vm284, %v575, %v582
        %v584 = vrot.slane %v579, 4
        %s588 = scalar_lea.vmem [#allocation2], 108
        %v589 = vld [vmem:[%s588] sm:$0xf]
        %v590 = vsel %vm308, %v574, %v589
        %591 = vst [vmem:[%s588] sm:$0xf] %v590
        %592 = vst.msk [vmem:[%s588 + $0x4] sm:$0xf] %vm197, %v583
        %v593 = vld [vmem:[%s588 + $0x8] sm:$0x1]
        %v594 = vsel %vm314, %v584, %v593
        %595 = vst [vmem:[%s588 + $0x8] sm:$0x1] %v594
      $region40: #{tpu_custom_call.1} parent=31 // pred_fallthru
        _
      %v596 = vld [vmem:[#allocation2] sm:$0xf]
      %v597 = vld [vmem:[#allocation2 + $0x4] sm:$0xf]
      %v598 = vld [vmem:[#allocation2 + $0xc] sm:$0xf]
      %v599 = vld [vmem:[#allocation2 + $0x10] sm:$0xf]
      %v600 = vld [vmem:[#allocation2 + $0x18] sm:$0xf]
      %v601 = vld [vmem:[#allocation2 + $0x1c] sm:$0xf]
      %v602 = vld [vmem:[#allocation2 + $0x24] sm:$0xf]
      %v603 = vld [vmem:[#allocation2 + $0x28] sm:$0xf]
      %v604 = vld [vmem:[#allocation2 + $0x30] sm:$0xf]
      %v605 = vld [vmem:[#allocation2 + $0x34] sm:$0xf]
      %v606 = vld [vmem:[#allocation2 + $0x3c] sm:$0xf]
      %v607 = vld [vmem:[#allocation2 + $0x40] sm:$0xf]
      %v608 = vld [vmem:[#allocation2 + $0x48] sm:$0xf]
      %v609 = vld [vmem:[#allocation2 + $0x4c] sm:$0xf]
      %v610 = vld [vmem:[#allocation2 + $0x54] sm:$0xf]
      %v611 = vld [vmem:[#allocation2 + $0x58] sm:$0xf]
      %v612 = vld [vmem:[#allocation2 + $0x8] sm:$0x1]
      %v613 = vld [vmem:[#allocation2 + $0x14] sm:$0x1]
      %v614 = vld [vmem:[#allocation2 + $0x20] sm:$0x1]
      %v615 = vld [vmem:[#allocation2 + $0x2c] sm:$0x1]
      %v616 = vld [vmem:[#allocation2 + $0x38] sm:$0x1]
      %v617 = vld [vmem:[#allocation2 + $0x44] sm:$0x1]
      %v618 = vld [vmem:[#allocation2 + $0x50] sm:$0x1]
      %v619 = vld [vmem:[#allocation2 + $0x5c] sm:$0x1]
      %v620 = vld [vmem:[#allocation2] sm:$0xe]
      %v621 = vld [vmem:[#allocation2 + $0xc] sm:$0xe]
      %v622 = vld [vmem:[#allocation2 + $0x18] sm:$0xe]
      %v623 = vld [vmem:[#allocation2 + $0x24] sm:$0xe]
      %v624 = vld [vmem:[#allocation2 + $0x30] sm:$0xe]
      %v625 = vld [vmem:[#allocation2 + $0x3c] sm:$0xe]
      %v626 = vld [vmem:[#allocation2 + $0x48] sm:$0xe]
      %v627 = vld [vmem:[#allocation2 + $0x54] sm:$0xe]
      %v628 = vld [vmem:[%s305] sm:$0xf]
      %v629 = vld [vmem:[%s305 + $0x4] sm:$0xf]
      %v630 = vld [vmem:[%s305 + $0xc] sm:$0xf]
      %v631 = vld [vmem:[%s305 + $0x10] sm:$0xf]
      %v632 = vld [vmem:[%s305 + $0x18] sm:$0xf]
      %v633 = vld [vmem:[%s305 + $0x1c] sm:$0xf]
      %v634 = vld [vmem:[%s305 + $0x24] sm:$0xf]
      %v635 = vld [vmem:[%s305 + $0x28] sm:$0xf]
      %v636 = vld [vmem:[%s305 + $0x30] sm:$0xf]
      %v637 = vld [vmem:[%s305 + $0x34] sm:$0xf]
      %v638 = vld [vmem:[%s305 + $0x3c] sm:$0xf]
      %v639 = vld [vmem:[%s305 + $0x40] sm:$0xf]
      %v640 = vld [vmem:[%s305 + $0x48] sm:$0xf]
      %v641 = vld [vmem:[%s305 + $0x4c] sm:$0xf]
      %v642 = vld [vmem:[%s305 + $0x54] sm:$0xf]
      %v643 = vld [vmem:[%s305 + $0x58] sm:$0xf]
      %v644 = vld [vmem:[%s305 + $0x8] sm:$0x1]
      %v645 = vld [vmem:[%s305 + $0x14] sm:$0x1]
      %v646 = vld [vmem:[%s305 + $0x20] sm:$0x1]
      %v647 = vld [vmem:[%s305 + $0x2c] sm:$0x1]
      %v648 = vld [vmem:[%s305 + $0x38] sm:$0x1]
      %v649 = vld [vmem:[%s305 + $0x44] sm:$0x1]
      %v650 = vld [vmem:[%s305 + $0x50] sm:$0x1]
      %v651 = vld [vmem:[%s305 + $0x5c] sm:$0x1]
      %v652 = vld [vmem:[%s305] sm:$0xe]
      %v653 = vld [vmem:[%s305 + $0xc] sm:$0xe]
      %v654 = vld [vmem:[%s305 + $0x18] sm:$0xe]
      %v655 = vld [vmem:[%s305 + $0x24] sm:$0xe]
      %v656 = vld [vmem:[%s305 + $0x30] sm:$0xe]
      %v657 = vld [vmem:[%s305 + $0x3c] sm:$0xe]
      %v658 = vld [vmem:[%s305 + $0x48] sm:$0xe]
      %v659 = vld [vmem:[%s305 + $0x54] sm:$0xe]
      %v660 = vld [vmem:[%s344] sm:$0xf]
      %v661 = vld [vmem:[%s344 + $0x4] sm:$0xf]
      %v662 = vld [vmem:[%s344 + $0xc] sm:$0xf]
      %v663 = vld [vmem:[%s344 + $0x10] sm:$0xf]
      %v664 = vld [vmem:[%s344 + $0x18] sm:$0xf]
      %v665 = vld [vmem:[%s344 + $0x1c] sm:$0xf]
      %v666 = vld [vmem:[%s344 + $0x24] sm:$0xf]
      %v667 = vld [vmem:[%s344 + $0x28] sm:$0xf]
      %v668 = vld [vmem:[%s344 + $0x30] sm:$0xf]
      %v669 = vld [vmem:[%s344 + $0x34] sm:$0xf]
      %v670 = vld [vmem:[%s344 + $0x3c] sm:$0xf]
      %v671 = vld [vmem:[%s344 + $0x40] sm:$0xf]
      %v672 = vld [vmem:[%s344 + $0x48] sm:$0xf]
      %v673 = vld [vmem:[%s344 + $0x4c] sm:$0xf]
      %v674 = vld [vmem:[%s344 + $0x54] sm:$0xf]
      %v675 = vld [vmem:[%s344 + $0x58] sm:$0xf]
      %v676 = vld [vmem:[%s344 + $0x8] sm:$0x1]
      %v677 = vld [vmem:[%s344 + $0x14] sm:$0x1]
      %v678 = vld [vmem:[%s344 + $0x20] sm:$0x1]
      %v679 = vld [vmem:[%s344 + $0x2c] sm:$0x1]
      %v680 = vld [vmem:[%s344 + $0x38] sm:$0x1]
      %v681 = vld [vmem:[%s344 + $0x44] sm:$0x1]
      %v682 = vld [vmem:[%s344 + $0x50] sm:$0x1]
      %v683 = vld [vmem:[%s344 + $0x5c] sm:$0x1]
      %v684 = vld [vmem:[%s344] sm:$0xe]
      %v685 = vld [vmem:[%s344 + $0xc] sm:$0xe]
      %v686 = vld [vmem:[%s344 + $0x18] sm:$0xe]
      %v687 = vld [vmem:[%s344 + $0x24] sm:$0xe]
      %v688 = vld [vmem:[%s344 + $0x30] sm:$0xe]
      %v689 = vld [vmem:[%s344 + $0x3c] sm:$0xe]
      %v690 = vld [vmem:[%s344 + $0x48] sm:$0xe]
      %v691 = vld [vmem:[%s344 + $0x54] sm:$0xe]
      %v708 = vunpack.c.l.b16 %v596
      %v709 = vunpack.c.l.b16 %v597
      %v710 = vunpack.c.l.b16 %v598
      %v711 = vunpack.c.l.b16 %v599
      %v712 = vunpack.c.l.b16 %v600
      %v713 = vunpack.c.l.b16 %v601
      %v714 = vunpack.c.l.b16 %v602
      %v715 = vunpack.c.l.b16 %v603
      %v716 = vunpack.c.l.b16 %v604
      %v717 = vunpack.c.l.b16 %v605
      %v718 = vunpack.c.l.b16 %v606
      %v719 = vunpack.c.l.b16 %v607
      %v720 = vunpack.c.l.b16 %v608
      %v721 = vunpack.c.l.b16 %v609
      %v722 = vunpack.c.l.b16 %v610
      %v723 = vunpack.c.l.b16 %v611
      %v724 = vpack.c.b16 %v709, %v708
      %v725 = vpack.c.b16 %v711, %v710
      %v726 = vpack.c.b16 %v713, %v712
      %v727 = vpack.c.b16 %v715, %v714
      %v728 = vpack.c.b16 %v717, %v716
      %v729 = vpack.c.b16 %v719, %v718
      %v730 = vpack.c.b16 %v721, %v720
      %v731 = vpack.c.b16 %v723, %v722
      %v740 = vunpack.c.l.b16 %v612
      %v741 = vunpack.c.l.b16 %v613
      %v742 = vunpack.c.l.b16 %v614
      %v743 = vunpack.c.l.b16 %v615
      %v744 = vunpack.c.l.b16 %v616
      %v745 = vunpack.c.l.b16 %v617
      %v746 = vunpack.c.l.b16 %v618
      %v747 = vunpack.c.l.b16 %v619
      %v748 = vpack.c.b16 %v740, %v740
      %v749 = vpack.c.b16 %v741, %v741
      %v750 = vpack.c.b16 %v742, %v742
      %v751 = vpack.c.b16 %v743, %v743
      %v752 = vpack.c.b16 %v744, %v744
      %v753 = vpack.c.b16 %v745, %v745
      %v754 = vpack.c.b16 %v746, %v746
      %v755 = vpack.c.b16 %v747, %v747
      %vm756 = vsmask.f32 7424
      %v758 = vshrl.u32 %v724, 16
      %v760 = vshll.u32 %v724, 16
      %v762 = vrot.slane %v760, 1
      %v763 = vor.u32 %v758, %v762
      %v765 = vshll.u32 %v748, 16
      %v767 = vrot.slane %v765, 1
      %v768 = vsel %vm756, %v763, %v767
      %v770 = vshrl.u32 %v725, 16
      %v772 = vshll.u32 %v725, 16
      %v774 = vrot.slane %v772, 1
      %v775 = vor.u32 %v770, %v774
      %v777 = vshll.u32 %v749, 16
      %v779 = vrot.slane %v777, 1
      %v780 = vsel %vm756, %v775, %v779
      %v782 = vshrl.u32 %v726, 16
      %v784 = vshll.u32 %v726, 16
      %v786 = vrot.slane %v784, 1
      %v787 = vor.u32 %v782, %v786
      %v789 = vshll.u32 %v750, 16
      %v791 = vrot.slane %v789, 1
      %v792 = vsel %vm756, %v787, %v791
      %v794 = vshrl.u32 %v727, 16
      %v796 = vshll.u32 %v727, 16
      %v798 = vrot.slane %v796, 1
      %v799 = vor.u32 %v794, %v798
      %v801 = vshll.u32 %v751, 16
      %v803 = vrot.slane %v801, 1
      %v804 = vsel %vm756, %v799, %v803
      %v806 = vshrl.u32 %v728, 16
      %v808 = vshll.u32 %v728, 16
      %v810 = vrot.slane %v808, 1
      %v811 = vor.u32 %v806, %v810
      %v813 = vshll.u32 %v752, 16
      %v815 = vrot.slane %v813, 1
      %v816 = vsel %vm756, %v811, %v815
      %v818 = vshrl.u32 %v729, 16
      %v820 = vshll.u32 %v729, 16
      %v822 = vrot.slane %v820, 1
      %v823 = vor.u32 %v818, %v822
      %v825 = vshll.u32 %v753, 16
      %v827 = vrot.slane %v825, 1
      %v828 = vsel %vm756, %v823, %v827
      %v830 = vshrl.u32 %v730, 16
      %v832 = vshll.u32 %v730, 16
      %v834 = vrot.slane %v832, 1
      %v835 = vor.u32 %v830, %v834
      %v837 = vshll.u32 %v754, 16
      %v839 = vrot.slane %v837, 1
      %v840 = vsel %vm756, %v835, %v839
      %v842 = vshrl.u32 %v731, 16
      %v844 = vshll.u32 %v731, 16
      %v846 = vrot.slane %v844, 1
      %v847 = vor.u32 %v842, %v846
      %v849 = vshll.u32 %v755, 16
      %v851 = vrot.slane %v849, 1
      %v852 = vsel %vm756, %v847, %v851
      %853 = vrot.lane.b32.xlu0 %v768, 4
      %v854 = vpop.permute.xlu0 %853
      %855 = vrot.lane.b32.xlu0 %v780, 4
      %v856 = vpop.permute.xlu0 %855
      %857 = vrot.lane.b32.xlu0 %v792, 4
      %v858 = vpop.permute.xlu0 %857
      %859 = vrot.lane.b32.xlu0 %v804, 4
      %v860 = vpop.permute.xlu0 %859
      %861 = vrot.lane.b32.xlu0 %v816, 4
      %v862 = vpop.permute.xlu0 %861
      %863 = vrot.lane.b32.xlu0 %v828, 4
      %v864 = vpop.permute.xlu0 %863
      %865 = vrot.lane.b32.xlu0 %v840, 4
      %v866 = vpop.permute.xlu0 %865
      %867 = vrot.lane.b32.xlu0 %v852, 4
      %v868 = vpop.permute.xlu0 %867
      %v877 = vunpack.c.l.b16 %v620
      %v878 = vunpack.c.l.b16 %v621
      %v879 = vunpack.c.l.b16 %v622
      %v880 = vunpack.c.l.b16 %v623
      %v881 = vunpack.c.l.b16 %v624
      %v882 = vunpack.c.l.b16 %v625
      %v883 = vunpack.c.l.b16 %v626
      %v884 = vunpack.c.l.b16 %v627
      %v885 = vpack.c.b16 %v709, %v877
      %v886 = vpack.c.b16 %v711, %v878
      %v887 = vpack.c.b16 %v713, %v879
      %v888 = vpack.c.b16 %v715, %v880
      %v889 = vpack.c.b16 %v717, %v881
      %v890 = vpack.c.b16 %v719, %v882
      %v891 = vpack.c.b16 %v721, %v883
      %v892 = vpack.c.b16 %v723, %v884
      %vm893 = vcmask 1046528
      %v894 = vrot.slane %v885, 1
      %v895 = vrot.slane %v748, 1
      %v896 = vsel %vm893, %v894, %v895
      %v897 = vrot.slane %v886, 1
      %v898 = vrot.slane %v749, 1
      %v899 = vsel %vm893, %v897, %v898
      %v900 = vrot.slane %v887, 1
      %v901 = vrot.slane %v750, 1
      %v902 = vsel %vm893, %v900, %v901
      %v903 = vrot.slane %v888, 1
      %v904 = vrot.slane %v751, 1
      %v905 = vsel %vm893, %v903, %v904
      %v906 = vrot.slane %v889, 1
      %v907 = vrot.slane %v752, 1
      %v908 = vsel %vm893, %v906, %v907
      %v909 = vrot.slane %v890, 1
      %v910 = vrot.slane %v753, 1
      %v911 = vsel %vm893, %v909, %v910
      %v912 = vrot.slane %v891, 1
      %v913 = vrot.slane %v754, 1
      %v914 = vsel %vm893, %v912, %v913
      %v915 = vrot.slane %v892, 1
      %v916 = vrot.slane %v755, 1
      %v917 = vsel %vm893, %v915, %v916
      %918 = vrot.lane.b32.xlu0 %v896, 8
      %v919 = vpop.permute.xlu0 %918
      %920 = vrot.lane.b32.xlu0 %v899, 8
      %v921 = vpop.permute.xlu0 %920
      %922 = vrot.lane.b32.xlu0 %v902, 8
      %v923 = vpop.permute.xlu0 %922
      %924 = vrot.lane.b32.xlu0 %v905, 8
      %v925 = vpop.permute.xlu0 %924
      %926 = vrot.lane.b32.xlu0 %v908, 8
      %v927 = vpop.permute.xlu0 %926
      %928 = vrot.lane.b32.xlu0 %v911, 8
      %v929 = vpop.permute.xlu0 %928
      %930 = vrot.lane.b32.xlu0 %v914, 8
      %v931 = vpop.permute.xlu0 %930
      %932 = vrot.lane.b32.xlu0 %v917, 8
      %v933 = vpop.permute.xlu0 %932
      %v950 = vunpack.c.l.b16 %v628
      %v951 = vunpack.c.l.b16 %v629
      %v952 = vunpack.c.l.b16 %v630
      %v953 = vunpack.c.l.b16 %v631
      %v954 = vunpack.c.l.b16 %v632
      %v955 = vunpack.c.l.b16 %v633
      %v956 = vunpack.c.l.b16 %v634
      %v957 = vunpack.c.l.b16 %v635
      %v958 = vunpack.c.l.b16 %v636
      %v959 = vunpack.c.l.b16 %v637
      %v960 = vunpack.c.l.b16 %v638
      %v961 = vunpack.c.l.b16 %v639
      %v962 = vunpack.c.l.b16 %v640
      %v963 = vunpack.c.l.b16 %v641
      %v964 = vunpack.c.l.b16 %v642
      %v965 = vunpack.c.l.b16 %v643
      %v966 = vpack.c.b16 %v951, %v950
      %v967 = vpack.c.b16 %v953, %v952
      %v968 = vpack.c.b16 %v955, %v954
      %v969 = vpack.c.b16 %v957, %v956
      %v970 = vpack.c.b16 %v959, %v958
      %v971 = vpack.c.b16 %v961, %v960
      %v972 = vpack.c.b16 %v963, %v962
      %v973 = vpack.c.b16 %v965, %v964
      %974 = vrot.lane.b32.xlu0 %v966, 12
      %v975 = vpop.permute.xlu0 %974
      %976 = vrot.lane.b32.xlu0 %v967, 12
      %v977 = vpop.permute.xlu0 %976
      %978 = vrot.lane.b32.xlu0 %v968, 12
      %v979 = vpop.permute.xlu0 %978
      %980 = vrot.lane.b32.xlu0 %v969, 12
      %v981 = vpop.permute.xlu0 %980
      %982 = vrot.lane.b32.xlu0 %v970, 12
      %v983 = vpop.permute.xlu0 %982
      %984 = vrot.lane.b32.xlu0 %v971, 12
      %v985 = vpop.permute.xlu0 %984
      %986 = vrot.lane.b32.xlu0 %v972, 12
      %v987 = vpop.permute.xlu0 %986
      %988 = vrot.lane.b32.xlu0 %v973, 12
      %v989 = vpop.permute.xlu0 %988
      %v998 = vunpack.c.l.b16 %v644
      %v999 = vunpack.c.l.b16 %v645
      %v1000 = vunpack.c.l.b16 %v646
      %v1001 = vunpack.c.l.b16 %v647
      %v1002 = vunpack.c.l.b16 %v648
      %v1003 = vunpack.c.l.b16 %v649
      %v1004 = vunpack.c.l.b16 %v650
      %v1005 = vunpack.c.l.b16 %v651
      %v1006 = vpack.c.b16 %v998, %v998
      %v1007 = vpack.c.b16 %v999, %v999
      %v1008 = vpack.c.b16 %v1000, %v1000
      %v1009 = vpack.c.b16 %v1001, %v1001
      %v1010 = vpack.c.b16 %v1002, %v1002
      %v1011 = vpack.c.b16 %v1003, %v1003
      %v1012 = vpack.c.b16 %v1004, %v1004
      %v1013 = vpack.c.b16 %v1005, %v1005
      %v1015 = vshrl.u32 %v966, 16
      %v1017 = vshll.u32 %v966, 16
      %v1019 = vrot.slane %v1017, 1
      %v1020 = vor.u32 %v1015, %v1019
      %v1022 = vshll.u32 %v1006, 16
      %v1024 = vrot.slane %v1022, 1
      %v1025 = vsel %vm756, %v1020, %v1024
      %v1027 = vshrl.u32 %v967, 16
      %v1029 = vshll.u32 %v967, 16
      %v1031 = vrot.slane %v1029, 1
      %v1032 = vor.u32 %v1027, %v1031
      %v1034 = vshll.u32 %v1007, 16
      %v1036 = vrot.slane %v1034, 1
      %v1037 = vsel %vm756, %v1032, %v1036
      %v1039 = vshrl.u32 %v968, 16
      %v1041 = vshll.u32 %v968, 16
      %v1043 = vrot.slane %v1041, 1
      %v1044 = vor.u32 %v1039, %v1043
      %v1046 = vshll.u32 %v1008, 16
      %v1048 = vrot.slane %v1046, 1
      %v1049 = vsel %vm756, %v1044, %v1048
      %v1051 = vshrl.u32 %v969, 16
      %v1053 = vshll.u32 %v969, 16
      %v1055 = vrot.slane %v1053, 1
      %v1056 = vor.u32 %v1051, %v1055
      %v1058 = vshll.u32 %v1009, 16
      %v1060 = vrot.slane %v1058, 1
      %v1061 = vsel %vm756, %v1056, %v1060
      %v1063 = vshrl.u32 %v970, 16
      %v1065 = vshll.u32 %v970, 16
      %v1067 = vrot.slane %v1065, 1
      %v1068 = vor.u32 %v1063, %v1067
      %v1070 = vshll.u32 %v1010, 16
      %v1072 = vrot.slane %v1070, 1
      %v1073 = vsel %vm756, %v1068, %v1072
      %v1075 = vshrl.u32 %v971, 16
      %v1077 = vshll.u32 %v971, 16
      %v1079 = vrot.slane %v1077, 1
      %v1080 = vor.u32 %v1075, %v1079
      %v1082 = vshll.u32 %v1011, 16
      %v1084 = vrot.slane %v1082, 1
      %v1085 = vsel %vm756, %v1080, %v1084
      %v1087 = vshrl.u32 %v972, 16
      %v1089 = vshll.u32 %v972, 16
      %v1091 = vrot.slane %v1089, 1
      %v1092 = vor.u32 %v1087, %v1091
      %v1094 = vshll.u32 %v1012, 16
      %v1096 = vrot.slane %v1094, 1
      %v1097 = vsel %vm756, %v1092, %v1096
      %v1099 = vshrl.u32 %v973, 16
      %v1101 = vshll.u32 %v973, 16
      %v1103 = vrot.slane %v1101, 1
      %v1104 = vor.u32 %v1099, %v1103
      %v1106 = vshll.u32 %v1013, 16
      %v1108 = vrot.slane %v1106, 1
      %v1109 = vsel %vm756, %v1104, %v1108
      %1110 = vrot.lane.b32.xlu0 %v1025, 16
      %v1111 = vpop.permute.xlu0 %1110
      %1112 = vrot.lane.b32.xlu0 %v1037, 16
      %v1113 = vpop.permute.xlu0 %1112
      %1114 = vrot.lane.b32.xlu0 %v1049, 16
      %v1115 = vpop.permute.xlu0 %1114
      %1116 = vrot.lane.b32.xlu0 %v1061, 16
      %v1117 = vpop.permute.xlu0 %1116
      %1118 = vrot.lane.b32.xlu0 %v1073, 16
      %v1119 = vpop.permute.xlu0 %1118
      %1120 = vrot.lane.b32.xlu0 %v1085, 16
      %v1121 = vpop.permute.xlu0 %1120
      %1122 = vrot.lane.b32.xlu0 %v1097, 16
      %v1123 = vpop.permute.xlu0 %1122
      %1124 = vrot.lane.b32.xlu0 %v1109, 16
      %v1125 = vpop.permute.xlu0 %1124
      %v1134 = vunpack.c.l.b16 %v652
      %v1135 = vunpack.c.l.b16 %v653
      %v1136 = vunpack.c.l.b16 %v654
      %v1137 = vunpack.c.l.b16 %v655
      %v1138 = vunpack.c.l.b16 %v656
      %v1139 = vunpack.c.l.b16 %v657
      %v1140 = vunpack.c.l.b16 %v658
      %v1141 = vunpack.c.l.b16 %v659
      %v1142 = vpack.c.b16 %v951, %v1134
      %v1143 = vpack.c.b16 %v953, %v1135
      %v1144 = vpack.c.b16 %v955, %v1136
      %v1145 = vpack.c.b16 %v957, %v1137
      %v1146 = vpack.c.b16 %v959, %v1138
      %v1147 = vpack.c.b16 %v961, %v1139
      %v1148 = vpack.c.b16 %v963, %v1140
      %v1149 = vpack.c.b16 %v965, %v1141
      %v1150 = vrot.slane %v1142, 1
      %v1151 = vrot.slane %v1006, 1
      %v1152 = vsel %vm893, %v1150, %v1151
      %v1153 = vrot.slane %v1143, 1
      %v1154 = vrot.slane %v1007, 1
      %v1155 = vsel %vm893, %v1153, %v1154
      %v1156 = vrot.slane %v1144, 1
      %v1157 = vrot.slane %v1008, 1
      %v1158 = vsel %vm893, %v1156, %v1157
      %v1159 = vrot.slane %v1145, 1
      %v1160 = vrot.slane %v1009, 1
      %v1161 = vsel %vm893, %v1159, %v1160
      %v1162 = vrot.slane %v1146, 1
      %v1163 = vrot.slane %v1010, 1
      %v1164 = vsel %vm893, %v1162, %v1163
      %v1165 = vrot.slane %v1147, 1
      %v1166 = vrot.slane %v1011, 1
      %v1167 = vsel %vm893, %v1165, %v1166
      %v1168 = vrot.slane %v1148, 1
      %v1169 = vrot.slane %v1012, 1
      %v1170 = vsel %vm893, %v1168, %v1169
      %v1171 = vrot.slane %v1149, 1
      %v1172 = vrot.slane %v1013, 1
      %v1173 = vsel %vm893, %v1171, %v1172
      %1174 = vrot.lane.b32.xlu0 %v1152, 20
      %v1175 = vpop.permute.xlu0 %1174
      %1176 = vrot.lane.b32.xlu0 %v1155, 20
      %v1177 = vpop.permute.xlu0 %1176
      %1178 = vrot.lane.b32.xlu0 %v1158, 20
      %v1179 = vpop.permute.xlu0 %1178
      %1180 = vrot.lane.b32.xlu0 %v1161, 20
      %v1181 = vpop.permute.xlu0 %1180
      %1182 = vrot.lane.b32.xlu0 %v1164, 20
      %v1183 = vpop.permute.xlu0 %1182
      %1184 = vrot.lane.b32.xlu0 %v1167, 20
      %v1185 = vpop.permute.xlu0 %1184
      %1186 = vrot.lane.b32.xlu0 %v1170, 20
      %v1187 = vpop.permute.xlu0 %1186
      %1188 = vrot.lane.b32.xlu0 %v1173, 20
      %v1189 = vpop.permute.xlu0 %1188
      %v1206 = vunpack.c.l.b16 %v660
      %v1207 = vunpack.c.l.b16 %v661
      %v1208 = vunpack.c.l.b16 %v662
      %v1209 = vunpack.c.l.b16 %v663
      %v1210 = vunpack.c.l.b16 %v664
      %v1211 = vunpack.c.l.b16 %v665
      %v1212 = vunpack.c.l.b16 %v666
      %v1213 = vunpack.c.l.b16 %v667
      %v1214 = vunpack.c.l.b16 %v668
      %v1215 = vunpack.c.l.b16 %v669
      %v1216 = vunpack.c.l.b16 %v670
      %v1217 = vunpack.c.l.b16 %v671
      %v1218 = vunpack.c.l.b16 %v672
      %v1219 = vunpack.c.l.b16 %v673
      %v1220 = vunpack.c.l.b16 %v674
      %v1221 = vunpack.c.l.b16 %v675
      %v1222 = vpack.c.b16 %v1207, %v1206
      %v1223 = vpack.c.b16 %v1209, %v1208
      %v1224 = vpack.c.b16 %v1211, %v1210
      %v1225 = vpack.c.b16 %v1213, %v1212
      %v1226 = vpack.c.b16 %v1215, %v1214
      %v1227 = vpack.c.b16 %v1217, %v1216
      %v1228 = vpack.c.b16 %v1219, %v1218
      %v1229 = vpack.c.b16 %v1221, %v1220
      %1230 = vrot.lane.b32.xlu0 %v1222, 24
      %v1231 = vpop.permute.xlu0 %1230
      %1232 = vrot.lane.b32.xlu0 %v1223, 24
      %v1233 = vpop.permute.xlu0 %1232
      %1234 = vrot.lane.b32.xlu0 %v1224, 24
      %v1235 = vpop.permute.xlu0 %1234
      %1236 = vrot.lane.b32.xlu0 %v1225, 24
      %v1237 = vpop.permute.xlu0 %1236
      %1238 = vrot.lane.b32.xlu0 %v1226, 24
      %v1239 = vpop.permute.xlu0 %1238
      %1240 = vrot.lane.b32.xlu0 %v1227, 24
      %v1241 = vpop.permute.xlu0 %1240
      %1242 = vrot.lane.b32.xlu0 %v1228, 24
      %v1243 = vpop.permute.xlu0 %1242
      %1244 = vrot.lane.b32.xlu0 %v1229, 24
      %v1245 = vpop.permute.xlu0 %1244
      %v1254 = vunpack.c.l.b16 %v676
      %v1255 = vunpack.c.l.b16 %v677
      %v1256 = vunpack.c.l.b16 %v678
      %v1257 = vunpack.c.l.b16 %v679
      %v1258 = vunpack.c.l.b16 %v680
      %v1259 = vunpack.c.l.b16 %v681
      %v1260 = vunpack.c.l.b16 %v682
      %v1261 = vunpack.c.l.b16 %v683
      %v1262 = vpack.c.b16 %v1254, %v1254
      %v1263 = vpack.c.b16 %v1255, %v1255
      %v1264 = vpack.c.b16 %v1256, %v1256
      %v1265 = vpack.c.b16 %v1257, %v1257
      %v1266 = vpack.c.b16 %v1258, %v1258
      %v1267 = vpack.c.b16 %v1259, %v1259
      %v1268 = vpack.c.b16 %v1260, %v1260
      %v1269 = vpack.c.b16 %v1261, %v1261
      %v1271 = vshrl.u32 %v1222, 16
      %v1273 = vshll.u32 %v1222, 16
      %v1275 = vrot.slane %v1273, 1
      %v1276 = vor.u32 %v1271, %v1275
      %v1278 = vshll.u32 %v1262, 16
      %v1280 = vrot.slane %v1278, 1
      %v1281 = vsel %vm756, %v1276, %v1280
      %v1283 = vshrl.u32 %v1223, 16
      %v1285 = vshll.u32 %v1223, 16
      %v1287 = vrot.slane %v1285, 1
      %v1288 = vor.u32 %v1283, %v1287
      %v1290 = vshll.u32 %v1263, 16
      %v1292 = vrot.slane %v1290, 1
      %v1293 = vsel %vm756, %v1288, %v1292
      %v1295 = vshrl.u32 %v1224, 16
      %v1297 = vshll.u32 %v1224, 16
      %v1299 = vrot.slane %v1297, 1
      %v1300 = vor.u32 %v1295, %v1299
      %v1302 = vshll.u32 %v1264, 16
      %v1304 = vrot.slane %v1302, 1
      %v1305 = vsel %vm756, %v1300, %v1304
      %v1307 = vshrl.u32 %v1225, 16
      %v1309 = vshll.u32 %v1225, 16
      %v1311 = vrot.slane %v1309, 1
      %v1312 = vor.u32 %v1307, %v1311
      %v1314 = vshll.u32 %v1265, 16
      %v1316 = vrot.slane %v1314, 1
      %v1317 = vsel %vm756, %v1312, %v1316
      %v1319 = vshrl.u32 %v1226, 16
      %v1321 = vshll.u32 %v1226, 16
      %v1323 = vrot.slane %v1321, 1
      %v1324 = vor.u32 %v1319, %v1323
      %v1326 = vshll.u32 %v1266, 16
      %v1328 = vrot.slane %v1326, 1
      %v1329 = vsel %vm756, %v1324, %v1328
      %v1331 = vshrl.u32 %v1227, 16
      %v1333 = vshll.u32 %v1227, 16
      %v1335 = vrot.slane %v1333, 1
      %v1336 = vor.u32 %v1331, %v1335
      %v1338 = vshll.u32 %v1267, 16
      %v1340 = vrot.slane %v1338, 1
      %v1341 = vsel %vm756, %v1336, %v1340
      %v1343 = vshrl.u32 %v1228, 16
      %v1345 = vshll.u32 %v1228, 16
      %v1347 = vrot.slane %v1345, 1
      %v1348 = vor.u32 %v1343, %v1347
      %v1350 = vshll.u32 %v1268, 16
      %v1352 = vrot.slane %v1350, 1
      %v1353 = vsel %vm756, %v1348, %v1352
      %v1355 = vshrl.u32 %v1229, 16
      %v1357 = vshll.u32 %v1229, 16
      %v1359 = vrot.slane %v1357, 1
      %v1360 = vor.u32 %v1355, %v1359
      %v1362 = vshll.u32 %v1269, 16
      %v1364 = vrot.slane %v1362, 1
      %v1365 = vsel %vm756, %v1360, %v1364
      %1366 = vrot.lane.b32.xlu0 %v1281, 28
      %v1367 = vpop.permute.xlu0 %1366
      %1368 = vrot.lane.b32.xlu0 %v1293, 28
      %v1369 = vpop.permute.xlu0 %1368
      %1370 = vrot.lane.b32.xlu0 %v1305, 28
      %v1371 = vpop.permute.xlu0 %1370
      %1372 = vrot.lane.b32.xlu0 %v1317, 28
      %v1373 = vpop.permute.xlu0 %1372
      %1374 = vrot.lane.b32.xlu0 %v1329, 28
      %v1375 = vpop.permute.xlu0 %1374
      %1376 = vrot.lane.b32.xlu0 %v1341, 28
      %v1377 = vpop.permute.xlu0 %1376
      %1378 = vrot.lane.b32.xlu0 %v1353, 28
      %v1379 = vpop.permute.xlu0 %1378
      %1380 = vrot.lane.b32.xlu0 %v1365, 28
      %v1381 = vpop.permute.xlu0 %1380
      %v1390 = vunpack.c.l.b16 %v684
      %v1391 = vunpack.c.l.b16 %v685
      %v1392 = vunpack.c.l.b16 %v686
      %v1393 = vunpack.c.l.b16 %v687
      %v1394 = vunpack.c.l.b16 %v688
      %v1395 = vunpack.c.l.b16 %v689
      %v1396 = vunpack.c.l.b16 %v690
      %v1397 = vunpack.c.l.b16 %v691
      %v1398 = vpack.c.b16 %v1207, %v1390
      %v1399 = vpack.c.b16 %v1209, %v1391
      %v1400 = vpack.c.b16 %v1211, %v1392
      %v1401 = vpack.c.b16 %v1213, %v1393
      %v1402 = vpack.c.b16 %v1215, %v1394
      %v1403 = vpack.c.b16 %v1217, %v1395
      %v1404 = vpack.c.b16 %v1219, %v1396
      %v1405 = vpack.c.b16 %v1221, %v1397
      %v1406 = vrot.slane %v1398, 1
      %v1407 = vrot.slane %v1262, 1
      %v1408 = vsel %vm893, %v1406, %v1407
      %v1409 = vrot.slane %v1399, 1
      %v1410 = vrot.slane %v1263, 1
      %v1411 = vsel %vm893, %v1409, %v1410
      %v1412 = vrot.slane %v1400, 1
      %v1413 = vrot.slane %v1264, 1
      %v1414 = vsel %vm893, %v1412, %v1413
      %v1415 = vrot.slane %v1401, 1
      %v1416 = vrot.slane %v1265, 1
      %v1417 = vsel %vm893, %v1415, %v1416
      %v1418 = vrot.slane %v1402, 1
      %v1419 = vrot.slane %v1266, 1
      %v1420 = vsel %vm893, %v1418, %v1419
      %v1421 = vrot.slane %v1403, 1
      %v1422 = vrot.slane %v1267, 1
      %v1423 = vsel %vm893, %v1421, %v1422
      %v1424 = vrot.slane %v1404, 1
      %v1425 = vrot.slane %v1268, 1
      %v1426 = vsel %vm893, %v1424, %v1425
      %v1427 = vrot.slane %v1405, 1
      %v1428 = vrot.slane %v1269, 1
      %v1429 = vsel %vm893, %v1427, %v1428
      %1430 = vrot.lane.b32.xlu0 %v1408, 32
      %v1431 = vpop.permute.xlu0 %1430
      %1432 = vrot.lane.b32.xlu0 %v1411, 32
      %v1433 = vpop.permute.xlu0 %1432
      %1434 = vrot.lane.b32.xlu0 %v1414, 32
      %v1435 = vpop.permute.xlu0 %1434
      %1436 = vrot.lane.b32.xlu0 %v1417, 32
      %v1437 = vpop.permute.xlu0 %1436
      %1438 = vrot.lane.b32.xlu0 %v1420, 32
      %v1439 = vpop.permute.xlu0 %1438
      %1440 = vrot.lane.b32.xlu0 %v1423, 32
      %v1441 = vpop.permute.xlu0 %1440
      %1442 = vrot.lane.b32.xlu0 %v1426, 32
      %v1443 = vpop.permute.xlu0 %1442
      %1444 = vrot.lane.b32.xlu0 %v1429, 32
      %v1445 = vpop.permute.xlu0 %1444
      %vm1446 = vcmask 31744
      %v1448 = vsel %vm1446, %v724, %v854
      %v1450 = vsel %vm1446, %v725, %v856
      %v1452 = vsel %vm1446, %v726, %v858
      %v1454 = vsel %vm1446, %v727, %v860
      %v1456 = vsel %vm1446, %v728, %v862
      %v1458 = vsel %vm1446, %v729, %v864
      %v1460 = vsel %vm1446, %v730, %v866
      %v1462 = vsel %vm1446, %v731, %v868
      %vm1463 = vcmask 64512
      %v1465 = vsel %vm1463, %v1448, %v919
      %v1467 = vsel %vm1463, %v1450, %v921
      %v1469 = vsel %vm1463, %v1452, %v923
      %v1471 = vsel %vm1463, %v1454, %v925
      %v1473 = vsel %vm1463, %v1456, %v927
      %v1475 = vsel %vm1463, %v1458, %v929
      %v1477 = vsel %vm1463, %v1460, %v931
      %v1479 = vsel %vm1463, %v1462, %v933
      %vm1480 = vcmask 97280
      %v1482 = vsel %vm1480, %v1465, %v975
      %v1484 = vsel %vm1480, %v1467, %v977
      %v1486 = vsel %vm1480, %v1469, %v979
      %v1488 = vsel %vm1480, %v1471, %v981
      %v1490 = vsel %vm1480, %v1473, %v983
      %v1492 = vsel %vm1480, %v1475, %v985
      %v1494 = vsel %vm1480, %v1477, %v987
      %v1496 = vsel %vm1480, %v1479, %v989
      %vm1497 = vcmask 130048
      %v1499 = vsel %vm1497, %v1482, %v1111
      %v1501 = vsel %vm1497, %v1484, %v1113
      %v1503 = vsel %vm1497, %v1486, %v1115
      %v1505 = vsel %vm1497, %v1488, %v1117
      %v1507 = vsel %vm1497, %v1490, %v1119
      %v1509 = vsel %vm1497, %v1492, %v1121
      %v1511 = vsel %vm1497, %v1494, %v1123
      %v1513 = vsel %vm1497, %v1496, %v1125
      %vm1514 = vcmask 162816
      %v1516 = vsel %vm1514, %v1499, %v1175
      %v1518 = vsel %vm1514, %v1501, %v1177
      %v1520 = vsel %vm1514, %v1503, %v1179
      %v1522 = vsel %vm1514, %v1505, %v1181
      %v1524 = vsel %vm1514, %v1507, %v1183
      %v1526 = vsel %vm1514, %v1509, %v1185
      %v1528 = vsel %vm1514, %v1511, %v1187
      %v1530 = vsel %vm1514, %v1513, %v1189
      %vm1531 = vcmask 195584
      %v1533 = vsel %vm1531, %v1516, %v1231
      %v1535 = vsel %vm1531, %v1518, %v1233
      %v1537 = vsel %vm1531, %v1520, %v1235
      %v1539 = vsel %vm1531, %v1522, %v1237
      %v1541 = vsel %vm1531, %v1524, %v1239
      %v1543 = vsel %vm1531, %v1526, %v1241
      %v1545 = vsel %vm1531, %v1528, %v1243
      %v1547 = vsel %vm1531, %v1530, %v1245
      %vm1548 = vcmask 228352
      %v1550 = vsel %vm1548, %v1533, %v1367
      %v1552 = vsel %vm1548, %v1535, %v1369
      %v1554 = vsel %vm1548, %v1537, %v1371
      %v1556 = vsel %vm1548, %v1539, %v1373
      %v1558 = vsel %vm1548, %v1541, %v1375
      %v1560 = vsel %vm1548, %v1543, %v1377
      %v1562 = vsel %vm1548, %v1545, %v1379
      %v1564 = vsel %vm1548, %v1547, %v1381
      %vm1565 = vcmask 261120
      %v1567 = vsel %vm1565, %v1550, %v1431
      %v1569 = vsel %vm1565, %v1552, %v1433
      %v1571 = vsel %vm1565, %v1554, %v1435
      %v1573 = vsel %vm1565, %v1556, %v1437
      %v1575 = vsel %vm1565, %v1558, %v1439
      %v1577 = vsel %vm1565, %v1560, %v1441
      %v1579 = vsel %vm1565, %v1562, %v1443
      %v1581 = vsel %vm1565, %v1564, %v1445
      %v1582 = vld [vmem:[%s1] sm:$0xf]
      %v1583 = vld [vmem:[%s1 + $0x4] sm:$0xf]
      %v1584 = vld [vmem:[%s1 + $0x8] sm:$0xf]
      %v1585 = vld [vmem:[%s1 + $0xc] sm:$0xf]
      %v1586 = vld [vmem:[%s1 + $0x10] sm:$0x3]
      %v1587 = vld [vmem:[%s2] sm:$0x1]
      %v1589 = vlaneseq
      %v1590 = vshrl.u32 %v1589, 7
      %v1591 = vsub.s32 0, %v1590
      %v1592 = vrot.slane %v1587, %v1591
      %v1599 = vunpack.c.l.b16 %v1582
      %v1600 = vunpack.c.l.b16 %v1583
      %v1601 = vunpack.c.l.b16 %v1584
      %v1602 = vunpack.c.l.b16 %v1585
      %v1603 = vunpack.c.l.b16 %v1586
      %v1604 = vpack.c.b16 %v1600, %v1599
      %v1605 = vpack.c.b16 %v1602, %v1601
      %v1606 = vpack.c.b16 %v1603, %v1603
      %vm1609 = vcmask 293888
      %v1610 = vsel %vm1609, %v1567, 0
      %v1612 = vsel %vm1609, %v1569, 0
      %v1614 = vsel %vm1609, %v1571, 0
      %v1616 = vsel %vm1609, %v1573, 0
      %v1618 = vsel %vm1609, %v1575, 0
      %v1620 = vsel %vm1609, %v1577, 0
      %v1622 = vsel %vm1609, %v1579, 0
      %v1624 = vsel %vm1609, %v1581, 0
      %vm1626 = vcmask 1041408
      %v1628 = vsel %vm1626, %v1606, 0
      %1630 = vmatprep.subr.bf16.mxu0 0
      %1631 = vmatpush1.bf16.msra.mxu0 %v1604
      %1632 = vmatprep.subr.bf16.mxu0 0
      %1633 = vmatpush1.bf16.msra.mxu0 %v1605
      %1634 = vmatprep.subr.bf16.mxu0 0
      %1635 = vmatpush1.bf16.msra.mxu0 %v1628
      %1636 = vmatprep.subr.bf16.mxu0 0
      %1637 = vmatpush1.bf16.msra.mxu0 0
      %1638 = vmatprep.subr.bf16.mxu0 0
      %1639 = vmatpush1.bf16.msra.mxu0 0
      %1640 = vmatprep.subr.bf16.mxu0 0
      %1641 = vmatpush1.bf16.msra.mxu0 0
      %1642 = vmatprep.subr.bf16.mxu0 0
      %1643 = vmatpush1.bf16.msra.mxu0 0
      %1644 = vmatprep.subr.bf16.mxu0 0
      %1645 = vmatpush1.bf16.msra.mxu0 0
      %1646 = vmatprep.subr.bf16.mxu0 0
      %1647 = vmatpush1.bf16.msra.mxu0 0
      %1648 = vmatprep.subr.bf16.mxu0 0
      %1649 = vmatpush1.bf16.msra.mxu0 0
      %1650 = vmatprep.subr.bf16.mxu0 0
      %1651 = vmatpush1.bf16.msra.mxu0 0
      %1652 = vmatprep.subr.bf16.mxu0 0
      %1653 = vmatpush1.bf16.msra.mxu0 0
      %1654 = vmatprep.subr.bf16.mxu0 0
      %1655 = vmatpush1.bf16.msra.mxu0 0
      %1656 = vmatprep.subr.bf16.mxu0 0
      %1657 = vmatpush1.bf16.msra.mxu0 0
      %1658 = vmatprep.subr.bf16.mxu0 0
      %1659 = vmatpush1.bf16.msra.mxu0 0
      %1660 = vmatprep.subr.bf16.mxu0 0
      %1661 = vmatpush1.bf16.msra.mxu0 0
      %1662 = vmatprep.mubr.bf16.mxu0 0
      %1663 = vmatmul.mubr.bf16.gmra.mrb[0].mxu0 %v1610
      %v1664 = vpop.f32.mrb[0].mxu0
      %v1665 = vadd.f32 %v1592, %v1664
      %v1666 = vpop.f32.mrb[0].mxu0
      %v1667 = vpop.f32.mrb[0].mxu0
      %v1668 = vadd.f32 %v1592, %v1667
      %v1669 = vpop.f32.mrb[0].mxu0
      %1670 = vmatprep.mubr.bf16.mxu0 0
      %1671 = vmatmul.mubr.bf16.gmra.mrb[0].mxu0 %v1612
      %v1672 = vpop.f32.mrb[0].mxu0
      %v1673 = vadd.f32 %v1592, %v1672
      %v1674 = vpop.f32.mrb[0].mxu0
      %v1675 = vpop.f32.mrb[0].mxu0
      %v1676 = vadd.f32 %v1592, %v1675
      %v1677 = vpop.f32.mrb[0].mxu0
      %1678 = vmatprep.mubr.bf16.mxu0 0
      %1679 = vmatmul.mubr.bf16.gmra.mrb[0].mxu0 %v1614
      %v1680 = vpop.f32.mrb[0].mxu0
      %v1681 = vadd.f32 %v1592, %v1680
      %v1682 = vpop.f32.mrb[0].mxu0
      %v1683 = vpop.f32.mrb[0].mxu0
      %v1684 = vadd.f32 %v1592, %v1683
      %v1685 = vpop.f32.mrb[0].mxu0
      %1686 = vmatprep.mubr.bf16.mxu0 0
      %1687 = vmatmul.mubr.bf16.gmra.mrb[0].mxu0 %v1616
      %v1688 = vpop.f32.mrb[0].mxu0
      %v1689 = vadd.f32 %v1592, %v1688
      %v1690 = vpop.f32.mrb[0].mxu0
      %v1691 = vpop.f32.mrb[0].mxu0
      %v1692 = vadd.f32 %v1592, %v1691
      %v1693 = vpop.f32.mrb[0].mxu0
      %1694 = vmatprep.mubr.bf16.mxu0 0
      %1695 = vmatmul.mubr.bf16.gmra.mrb[0].mxu0 %v1618
      %v1696 = vpop.f32.mrb[0].mxu0
      %v1697 = vadd.f32 %v1592, %v1696
      %v1698 = vpop.f32.mrb[0].mxu0
      %v1699 = vpop.f32.mrb[0].mxu0
      %v1700 = vadd.f32 %v1592, %v1699
      %v1701 = vpop.f32.mrb[0].mxu0
      %1702 = vmatprep.mubr.bf16.mxu0 0
      %1703 = vmatmul.mubr.bf16.gmra.mrb[0].mxu0 %v1620
      %v1704 = vpop.f32.mrb[0].mxu0
      %v1705 = vadd.f32 %v1592, %v1704
      %v1706 = vpop.f32.mrb[0].mxu0
      %v1707 = vpop.f32.mrb[0].mxu0
      %v1708 = vadd.f32 %v1592, %v1707
      %v1709 = vpop.f32.mrb[0].mxu0
      %1710 = vmatprep.mubr.bf16.mxu0 0
      %1711 = vmatmul.mubr.bf16.gmra.mrb[0].mxu0 %v1622
      %v1712 = vpop.f32.mrb[0].mxu0
      %v1713 = vadd.f32 %v1592, %v1712
      %v1714 = vpop.f32.mrb[0].mxu0
      %v1715 = vpop.f32.mrb[0].mxu0
      %v1716 = vadd.f32 %v1592, %v1715
      %v1717 = vpop.f32.mrb[0].mxu0
      %1718 = vmatprep.mubr.bf16.mxu0 0
      %1719 = vmatmul.mubr.bf16.gmra.mrb[0].mxu0 %v1624
      %v1720 = vpop.f32.mrb[0].mxu0
      %v1721 = vadd.f32 %v1592, %v1720
      %v1722 = vpop.f32.mrb[0].mxu0
      %v1723 = vpop.f32.mrb[0].mxu0
      %v1724 = vadd.f32 %v1592, %v1723
      %v1725 = vpop.f32.mrb[0].mxu0
      %1726 = vdwg.mxu0
      %v1727 = vmax.f32 %v1665, 0.0
      %v1728 = vmax.f32 %v1668, 0.0
      %v1729 = vmax.f32 %v1673, 0.0
      %v1730 = vmax.f32 %v1676, 0.0
      %v1731 = vmax.f32 %v1681, 0.0
      %v1732 = vmax.f32 %v1684, 0.0
      %v1733 = vmax.f32 %v1689, 0.0
      %v1734 = vmax.f32 %v1692, 0.0
      %v1735 = vmax.f32 %v1697, 0.0
      %v1736 = vmax.f32 %v1700, 0.0
      %v1737 = vmax.f32 %v1705, 0.0
      %v1738 = vmax.f32 %v1708, 0.0
      %v1739 = vmax.f32 %v1713, 0.0
      %v1740 = vmax.f32 %v1716, 0.0
      %v1741 = vmax.f32 %v1721, 0.0
      %v1742 = vmax.f32 %v1724, 0.0
      %1743 = vst.msk [vmem:[%s194] sm:$0xff] %vm1463, %v1727
      %1744 = vst.msk [vmem:[%s194 + $0x8] sm:$0xff] %vm1463, %v1728
      %1745 = vst.msk [vmem:[%s194 + $0x10] sm:$0xff] %vm1463, %v1729
      %1746 = vst.msk [vmem:[%s194 + $0x18] sm:$0xff] %vm1463, %v1730
      %1747 = vst.msk [vmem:[%s194 + $0x20] sm:$0xff] %vm1463, %v1731
      %1748 = vst.msk [vmem:[%s194 + $0x28] sm:$0xff] %vm1463, %v1732
      %1749 = vst.msk [vmem:[%s194 + $0x30] sm:$0xff] %vm1463, %v1733
      %1750 = vst.msk [vmem:[%s194 + $0x38] sm:$0xff] %vm1463, %v1734
      %1751 = vst.msk [vmem:[%s194 + $0x40] sm:$0xff] %vm1463, %v1735
      %1752 = vst.msk [vmem:[%s194 + $0x48] sm:$0xff] %vm1463, %v1736
      %1753 = vst.msk [vmem:[%s194 + $0x50] sm:$0xff] %vm1463, %v1737
      %1754 = vst.msk [vmem:[%s194 + $0x58] sm:$0xff] %vm1463, %v1738
      %1755 = vst.msk [vmem:[%s194 + $0x60] sm:$0xff] %vm1463, %v1739
      %1756 = vst.msk [vmem:[%s194 + $0x68] sm:$0xff] %vm1463, %v1740
      %1757 = vst.msk [vmem:[%s194 + $0x70] sm:$0xff] %vm1463, %v1741
      %1758 = vst.msk [vmem:[%s194 + $0x78] sm:$0xff] %vm1463, %v1742
      %s1759 = smul.u32 8, %s19
      %p1760 = scmp.lt.s32.totalorder %s18, 1
      %s1761 = scalar_select %p1760, %s18, 1
      %p1762 = scmp.lt.s32.totalorder %s1759, 15
      %s1763 = scalar_select %p1762, %s1759, 15
      %s1764 = smul.addr %s1763, 2
      %s1765 = smul.addr %s1761, 32
      %s1766 = sadd.s32 %s1764, %s1765
      %s1767 = smul.addr %s1766, 8
      %s1768 = scalar_lea.vmem %s3, %s1767
      // Predicated region
      $region41: #{tpu_custom_call.1} parent=31 // pred_check
        %p1769 = pneg %p114
      $region42: #{tpu_custom_call.1} parent=31 // pred_check_branch
        %1771 = sbr.rel (%p1769) target = $region44
      $region43: #{tpu_custom_call.1} parent=31 // pred_region
        %s1772 = smul.u32 8, %s19
      $region44: #{tpu_custom_call.1} parent=31 // pred_fallthru
        _
    $region32: #{tpu_custom_call.1} parent=5 // pred_fallthru
      _
    %p1773 = scmp.le.s32.totalorder 2, %s9
    // Predicated region
    $region45: #{tpu_custom_call.1} parent=5 // pred_check
      %p1774 = pneg %p1773
    $region46: #{tpu_custom_call.1} parent=5 // pred_check_branch
      %1776 = sbr.rel (%p1774) target = $region48
    $region47: #{tpu_custom_call.1} parent=5 // pred_region
      %s1777 = ssub.s32 %s9, 2
      // Predicated region
      $region49: #{tpu_custom_call.1} parent=47 // pred_check
        %p1778 = pneg %p120
      $region50: #{tpu_custom_call.1} parent=47 // pred_check_branch
        %1780 = sbr.rel (%p1778) target = $region52
      $region51: #{tpu_custom_call.1} parent=47 // pred_region
        %s1781 = smul.u32 8, %s21
        %p1782 = scmp.lt.s32.totalorder %s20, 1
        %s1783 = scalar_select %p1782, %s20, 1
        %p1784 = scmp.lt.s32.totalorder %s1781, 15
        %s1785 = scalar_select %p1784, %s1781, 15
        %s1786 = smul.addr %s1785, 2
        %s1787 = smul.addr %s1783, 32
        %s1788 = sadd.s32 %s1786, %s1787
        %s1789 = smul.addr %s1788, 8
        %s1790 = scalar_lea.vmem %s3, %s1789
      $region52: #{tpu_custom_call.1} parent=47 // pred_fallthru
        _
    $region48: #{tpu_custom_call.1} parent=5 // pred_fallthru
      _
  $region6: #{tpu_custom_call.1} parent=0 // loop_footer
    %s13 = sadd.s32 1, %s9
  $region7: #{tpu_custom_call.1} parent=0 // loop_footer_branch
    %8 = sbr.rel target = $region3
  $region8: #{tpu_custom_call.1} parent=0 // loop_exit
    _

</llo_original>
